<compile_context>
chip_gen: v5e
topology: v5e:2x2
jax: 0.10.0
libtpu: 0.0.40
codegen_flags: <defaults>
</compile_context>

<pallas_src>
import jax
import jax.numpy as jnp
from jax import lax
from jax.experimental import pallas as pl
from jax.experimental.pallas import tpu as pltpu


def _round_up(x, m):
    return (x + m - 1) // m * m


# ----------------------------------------------------------------------------- kernel
def lstm_recurrence_kernel(gx_ref, whh_ref, wl_ref, bl_ref, out_ref):
    """Serial LSTM recurrence over time + final linear on the last hidden state.

    gx_ref : (S, B_BLK, 4*Hp) f32   precomputed x @ W_ih + bias, gate order (i, f, o, g)
    whh_ref: (Hp, 4*Hp)             hidden->gate weights, same gate order, zero-padded
    wl_ref : (Hp, Op)               final linear weight (transposed), zero-padded
    bl_ref : (1, Op) f32            final linear bias, zero-padded
    out_ref: (B_BLK, Op) f32
    """
    S, B, _ = gx_ref.shape
    Hp = whh_ref.shape[0]

    whh = whh_ref[...]  # hoisted: loaded once, reused every step

    def step(t, carry):
        h, c = carry
        # Single MXU matmul per step (the x projection was hoisted out of the loop).
        gates = gx_ref[t] + jnp.dot(
            h.astype(whh.dtype), whh, preferred_element_type=jnp.float32)
        # Gate order (i, f, o, g): one sigmoid over a contiguous, lane-aligned slab,
        # one tanh over the last lane-aligned slab.
        sig = jax.nn.sigmoid(gates[:, 0:3 * Hp])
        i = sig[:, 0:Hp]
        f = sig[:, Hp:2 * Hp]
        o = sig[:, 2 * Hp:3 * Hp]
        g = jnp.tanh(gates[:, 3 * Hp:4 * Hp])
        c_new = f * c + i * g
        h_new = o * jnp.tanh(c_new)
        return (h_new, c_new)

    h0 = jnp.zeros((B, Hp), jnp.float32)
    c0 = jnp.zeros((B, Hp), jnp.float32)
    # Unrolled so consecutive steps' MXU pushes / EUP work can overlap.
    h_last, _ = lax.fori_loop(0, S, step, (h0, c0), unroll=True)

    out_ref[...] = (
        jnp.dot(h_last.astype(wl_ref.dtype), wl_ref[...],
                preferred_element_type=jnp.float32)
        + bl_ref[...]
    )


# ------------------------------------------------------------------------ param packing
def _pack_gate_matrix(w, H, Hp, pad_in=None):
    """w: (4H, F), PyTorch row order [i; f; g; o] -> (F_pad, 4*Hp), gate order (i,f,o,g)."""
    F = w.shape[1]
    Fp = F if pad_in is None else pad_in
    i, f, g, o = w[0:H], w[H:2 * H], w[2 * H:3 * H], w[3 * H:4 * H]
    cols = []
    for blk in (i, f, o, g):
        bt = jnp.transpose(blk)                                    # (F, H)
        cols.append(jnp.pad(bt, ((0, Fp - F), (0, Hp - H))))
    return jnp.concatenate(cols, axis=1)                           # (Fp, 4*Hp)


def _pack_gate_bias(b, H, Hp):
    i, f, g, o = b[0:H], b[H:2 * H], b[2 * H:3 * H], b[3 * H:4 * H]
    parts = [jnp.pad(v, (0, Hp - H)) for v in (i, f, o, g)]
    return jnp.concatenate(parts).reshape(1, 4 * Hp)


# ----------------------------------------------------------------------------- wrapper
def stock_predictor_forward(x, params, *, matmul_dtype=jnp.float32, b_block=8):
    """x: (batch, seq, input_dim) float32. Returns (batch, output_dim) float32."""
    w_ih, w_hh, b_ih, b_hh, w_lin, b_lin = (
        params["w_ih"], params["w_hh"], params["b_ih"], params["b_hh"],
        params["w_lin"], params["b_lin"],
    )
    B, S, D = x.shape
    H = w_hh.shape[1]
    O = w_lin.shape[0]

    Hp = _round_up(H, 128)          # lane-align each gate
    Op = _round_up(O, 128)          # lane-dense output stores
    Bp = _round_up(B, b_block)      # sublane-align batch (multiple of the batch block)
    G = 4 * Hp

    # Packed / zero-padded weights (gate order i, f, o, g).
    w_ih_p = _pack_gate_matrix(w_ih.astype(jnp.float32), H, Hp)             # (D, G)
    w_hh_p = _pack_gate_matrix(w_hh.astype(jnp.float32), H, Hp, pad_in=Hp)  # (Hp, G)
    bias_p = _pack_gate_bias((b_ih + b_hh).astype(jnp.float32), H, Hp)      # (1, G)
    w_lin_p = jnp.pad(jnp.transpose(w_lin).astype(jnp.float32),
                      ((0, Hp - H), (0, Op - O)))                           # (Hp, Op)
    b_lin_p = jnp.pad(b_lin.astype(jnp.float32), (0, Op - O)).reshape(1, Op)

    # Time-major input, batch padded to a sublane multiple.
    x_tm = jnp.transpose(x, (1, 0, 2)).astype(jnp.float32)                  # (S, B, D)
    x_tm = jnp.pad(x_tm, ((0, 0), (0, Bp - B), (0, 0)))                     # (S, Bp, D)

    # Hoisted input projection: one large matmul for all timesteps (bias folded in;
    # XLA fuses the add, so gx is written to HBM exactly once).
    gx = jnp.einsum(
        "sbd,dg->sbg",
        x_tm.astype(matmul_dtype), w_ih_p.astype(matmul_dtype),
        preferred_element_type=jnp.float32,
    ) + bias_p                                                              # (S, Bp, G) f32

    # Scoped-VMEM budget: double-buffered gx tile + resident weights + headroom.
    itemsize = jnp.dtype(matmul_dtype).itemsize
    gx_tile_bytes = 2 * S * b_block * G * 4
    weight_bytes = (Hp * G + Hp * Op) * itemsize + Op * 4
    vmem_limit = min(100 * 1024 * 1024,
                     max(32 * 1024 * 1024, 2 * (gx_tile_bytes + weight_bytes)))

    grid = (Bp // b_block,)
    out = pl.pallas_call(
        lstm_recurrence_kernel,
        out_shape=jax.ShapeDtypeStruct((Bp, Op), jnp.float32),
        grid_spec=pltpu.PrefetchScalarGridSpec(
            num_scalar_prefetch=0,
            grid=grid,
            in_specs=[
                pl.BlockSpec((S, b_block, G), lambda b: (0, b, 0)),   # gx, blocked on batch
                pl.BlockSpec((Hp, G), lambda b: (0, 0)),              # W_hh (full, resident)
                pl.BlockSpec((Hp, Op), lambda b: (0, 0)),             # W_lin (full, resident)
                pl.BlockSpec((1, Op), lambda b: (0, 0)),              # b_lin (full, resident)
            ],
            out_specs=pl.BlockSpec((b_block, Op), lambda b: (b, 0)),
        ),
        compiler_params=pltpu.CompilerParams(
            dimension_semantics=("parallel",),    # batch blocks split across TCs (v7x)
            vmem_limit_bytes=vmem_limit,          # raise v5e's 16 MiB scoped default
        ),
    )(gx, w_hh_p.astype(matmul_dtype), w_lin_p.astype(matmul_dtype), b_lin_p)

    return out[:B, :O]


# --------------------------------------------------------------------------- reference
def init_params(key, input_dim, hidden_dim, output_dim=1):
    # Deterministic init mimicking PyTorch's uniform(-1/sqrt(H), 1/sqrt(H)).
    k = 1.0 / jnp.sqrt(hidden_dim)
    keys = jax.random.split(key, 6)
    return {
        "w_ih": jax.random.uniform(keys[0], (4 * hidden_dim, input_dim), jnp.float32, -k, k),
        "w_hh": jax.random.uniform(keys[1], (4 * hidden_dim, hidden_dim), jnp.float32, -k, k),
        "b_ih": jax.random.uniform(keys[2], (4 * hidden_dim,), jnp.float32, -k, k),
        "b_hh": jax.random.uniform(keys[3], (4 * hidden_dim,), jnp.float32, -k, k),
        "w_lin": jax.random.uniform(keys[4], (output_dim, hidden_dim), jnp.float32, -k, k),
        "b_lin": jax.random.uniform(keys[5], (output_dim,), jnp.float32, -k, k),
    }


def reference_forward(x, params):
    """Pure-JAX reference of the PyTorch module for validation."""
    w_ih, w_hh = params["w_ih"], params["w_hh"]
    b = params["b_ih"] + params["b_hh"]
    H = w_hh.shape[1]
    B, S, _ = x.shape

    def step(carry, x_t):
        h, c = carry
        gates = x_t @ w_ih.T + h @ w_hh.T + b
        i = jax.nn.sigmoid(gates[:, 0:H])
        f = jax.nn.sigmoid(gates[:, H:2 * H])
        g = jnp.tanh(gates[:, 2 * H:3 * H])
        o = jax.nn.sigmoid(gates[:, 3 * H:4 * H])
        c = f * c + i * g
        h = o * jnp.tanh(c)
        return (h, c), None

    (h, _), _ = lax.scan(step, (jnp.zeros((B, H)), jnp.zeros((B, H))),
                         jnp.transpose(x, (1, 0, 2)))
    return h @ params["w_lin"].T + params["b_lin"]


if __name__ == "__main__":
    batch, seq, input_dim, hidden_dim, output_dim = 2, 8, 4, 32, 1

    key = jax.random.PRNGKey(0)
    k_x, k_p = jax.random.split(key)
    x = jax.random.normal(k_x, (batch, seq, input_dim), dtype=jnp.float32)
    params = init_params(k_p, input_dim, hidden_dim, output_dim)

    out = stock_predictor_forward(x, params)   # f32 path (use matmul_dtype=bf16 on v6e/v7x)
    out = jax.block_until_ready(out)

    ref = reference_forward(x, params)
    assert out.shape == (batch, output_dim)
    assert jnp.allclose(out, ref, atol=1e-5, rtol=1e-5), (out, ref)
    print("KERNEL_OK")
</pallas_src>

<mosaic_0001>
module attributes {stable_mosaic.version = 11 : i64} {
  func.func @lstm_recurrence_kernel(%arg0: i32, %arg1: memref<8x8x512xf32, #tpu.memory_space<vmem>>, %arg2: memref<128x512xf32, #tpu.memory_space<vmem>>, %arg3: memref<128x128xf32, #tpu.memory_space<vmem>>, %arg4: memref<1x128xf32, #tpu.memory_space<vmem>>, %arg5: memref<8x128xf32, #tpu.memory_space<vmem>>) attributes {dimension_semantics = [#tpu.dimension_semantics<parallel>], iteration_bounds = array<i64: 1>, scalar_prefetch = 0 : i64, scratch_operands = 0 : i64, tpu.core_type = #tpu.core_type<tc>, window_params = [{transform_indices = @transform_0, window_bounds = array<i64: 8, 8, 512>}, {pipeline_mode = #tpu.pipeline_mode<synchronous>, transform_indices = @transform_1, window_bounds = array<i64: 128, 512>}, {pipeline_mode = #tpu.pipeline_mode<synchronous>, transform_indices = @transform_2, window_bounds = array<i64: 128, 128>}, {pipeline_mode = #tpu.pipeline_mode<synchronous>, transform_indices = @transform_3, window_bounds = array<i64: 1, 128>}, {transform_indices = @transform_4, window_bounds = array<i64: 8, 128>}]} {
    %c0 = arith.constant 0 : index
    %c0_0 = arith.constant 0 : index
    %0 = vector.load %arg2[%c0, %c0_0] : memref<128x512xf32, #tpu.memory_space<vmem>>, vector<128x512xf32>
    %cst = arith.constant 0.000000e+00 : f32
    %1 = vector.broadcast %cst : f32 to vector<8x128xf32>
    %cst_1 = arith.constant 0.000000e+00 : f32
    %2 = vector.broadcast %cst_1 : f32 to vector<8x128xf32>
    %c0_i32 = arith.constant 0 : i32
    %3 = arith.index_cast %c0_i32 : i32 to index
    %c0_2 = arith.constant 0 : index
    %c0_3 = arith.constant 0 : index
    %4 = vector.load %arg1[%3, %c0_2, %c0_3] : memref<8x8x512xf32, #tpu.memory_space<vmem>>, vector<1x8x512xf32>
    %5 = vector.shape_cast %4 : vector<1x8x512xf32> to vector<8x512xf32>
    %cst_4 = arith.constant dense<0.000000e+00> : vector<8x512xf32>
    %6 = tpu.matmul %1, %0, %cst_4 {dimension_numbers = #tpu.dot_dimension_numbers<[1], [0], [0], [1], [0, 0, 1, 1], [], []>} : vector<8x128xf32>, vector<128x512xf32>, vector<8x512xf32> -> vector<8x512xf32>
    %7 = arith.addf %5, %6 : vector<8x512xf32>
    %8 = vector.extract_strided_slice %7 {offsets = [0, 0], sizes = [8, 384], strides = [1, 1]} : vector<8x512xf32> to vector<8x384xf32>
    %9 = arith.negf %8 : vector<8x384xf32>
    %10 = math.exp %9 : vector<8x384xf32>
    %cst_5 = arith.constant 1.000000e+00 : f32
    %11 = vector.broadcast %cst_5 : f32 to vector<8x384xf32>
    %12 = arith.addf %11, %10 : vector<8x384xf32>
    %13 = arith.divf %11, %12 : vector<8x384xf32>
    %14 = vector.extract_strided_slice %13 {offsets = [0, 0], sizes = [8, 128], strides = [1, 1]} : vector<8x384xf32> to vector<8x128xf32>
    %15 = vector.extract_strided_slice %13 {offsets = [0, 128], sizes = [8, 128], strides = [1, 1]} : vector<8x384xf32> to vector<8x128xf32>
    %16 = vector.extract_strided_slice %13 {offsets = [0, 256], sizes = [8, 128], strides = [1, 1]} : vector<8x384xf32> to vector<8x128xf32>
    %17 = vector.extract_strided_slice %7 {offsets = [0, 384], sizes = [8, 128], strides = [1, 1]} : vector<8x512xf32> to vector<8x128xf32>
    %18 = math.tanh %17 : vector<8x128xf32>
    %19 = arith.mulf %15, %2 : vector<8x128xf32>
    %20 = arith.mulf %14, %18 : vector<8x128xf32>
    %21 = arith.addf %19, %20 : vector<8x128xf32>
    %22 = math.tanh %21 : vector<8x128xf32>
    %23 = arith.mulf %16, %22 : vector<8x128xf32>
    %c1_i32 = arith.constant 1 : i32
    %24 = arith.index_cast %c1_i32 : i32 to index
    %c0_6 = arith.constant 0 : index
    %c0_7 = arith.constant 0 : index
    %25 = vector.load %arg1[%24, %c0_6, %c0_7] : memref<8x8x512xf32, #tpu.memory_space<vmem>>, vector<1x8x512xf32>
    %26 = vector.shape_cast %25 : vector<1x8x512xf32> to vector<8x512xf32>
    %cst_8 = arith.constant dense<0.000000e+00> : vector<8x512xf32>
    %27 = tpu.matmul %23, %0, %cst_8 {dimension_numbers = #tpu.dot_dimension_numbers<[1], [0], [0], [1], [0, 0, 1, 1], [], []>} : vector<8x128xf32>, vector<128x512xf32>, vector<8x512xf32> -> vector<8x512xf32>
    %28 = arith.addf %26, %27 : vector<8x512xf32>
    %29 = vector.extract_strided_slice %28 {offsets = [0, 0], sizes = [8, 384], strides = [1, 1]} : vector<8x512xf32> to vector<8x384xf32>
    %30 = arith.negf %29 : vector<8x384xf32>
    %31 = math.exp %30 : vector<8x384xf32>
    %cst_9 = arith.constant 1.000000e+00 : f32
    %32 = vector.broadcast %cst_9 : f32 to vector<8x384xf32>
    %33 = arith.addf %32, %31 : vector<8x384xf32>
    %34 = arith.divf %32, %33 : vector<8x384xf32>
    %35 = vector.extract_strided_slice %34 {offsets = [0, 0], sizes = [8, 128], strides = [1, 1]} : vector<8x384xf32> to vector<8x128xf32>
    %36 = vector.extract_strided_slice %34 {offsets = [0, 128], sizes = [8, 128], strides = [1, 1]} : vector<8x384xf32> to vector<8x128xf32>
    %37 = vector.extract_strided_slice %34 {offsets = [0, 256], sizes = [8, 128], strides = [1, 1]} : vector<8x384xf32> to vector<8x128xf32>
    %38 = vector.extract_strided_slice %28 {offsets = [0, 384], sizes = [8, 128], strides = [1, 1]} : vector<8x512xf32> to vector<8x128xf32>
    %39 = math.tanh %38 : vector<8x128xf32>
    %40 = arith.mulf %36, %21 : vector<8x128xf32>
    %41 = arith.mulf %35, %39 : vector<8x128xf32>
    %42 = arith.addf %40, %41 : vector<8x128xf32>
    %43 = math.tanh %42 : vector<8x128xf32>
    %44 = arith.mulf %37, %43 : vector<8x128xf32>
    %c2_i32 = arith.constant 2 : i32
    %45 = arith.index_cast %c2_i32 : i32 to index
    %c0_10 = arith.constant 0 : index
    %c0_11 = arith.constant 0 : index
    %46 = vector.load %arg1[%45, %c0_10, %c0_11] : memref<8x8x512xf32, #tpu.memory_space<vmem>>, vector<1x8x512xf32>
    %47 = vector.shape_cast %46 : vector<1x8x512xf32> to vector<8x512xf32>
    %cst_12 = arith.constant dense<0.000000e+00> : vector<8x512xf32>
    %48 = tpu.matmul %44, %0, %cst_12 {dimension_numbers = #tpu.dot_dimension_numbers<[1], [0], [0], [1], [0, 0, 1, 1], [], []>} : vector<8x128xf32>, vector<128x512xf32>, vector<8x512xf32> -> vector<8x512xf32>
    %49 = arith.addf %47, %48 : vector<8x512xf32>
    %50 = vector.extract_strided_slice %49 {offsets = [0, 0], sizes = [8, 384], strides = [1, 1]} : vector<8x512xf32> to vector<8x384xf32>
    %51 = arith.negf %50 : vector<8x384xf32>
    %52 = math.exp %51 : vector<8x384xf32>
    %cst_13 = arith.constant 1.000000e+00 : f32
    %53 = vector.broadcast %cst_13 : f32 to vector<8x384xf32>
    %54 = arith.addf %53, %52 : vector<8x384xf32>
    %55 = arith.divf %53, %54 : vector<8x384xf32>
    %56 = vector.extract_strided_slice %55 {offsets = [0, 0], sizes = [8, 128], strides = [1, 1]} : vector<8x384xf32> to vector<8x128xf32>
    %57 = vector.extract_strided_slice %55 {offsets = [0, 128], sizes = [8, 128], strides = [1, 1]} : vector<8x384xf32> to vector<8x128xf32>
    %58 = vector.extract_strided_slice %55 {offsets = [0, 256], sizes = [8, 128], strides = [1, 1]} : vector<8x384xf32> to vector<8x128xf32>
    %59 = vector.extract_strided_slice %49 {offsets = [0, 384], sizes = [8, 128], strides = [1, 1]} : vector<8x512xf32> to vector<8x128xf32>
    %60 = math.tanh %59 : vector<8x128xf32>
    %61 = arith.mulf %57, %42 : vector<8x128xf32>
    %62 = arith.mulf %56, %60 : vector<8x128xf32>
    %63 = arith.addf %61, %62 : vector<8x128xf32>
    %64 = math.tanh %63 : vector<8x128xf32>
    %65 = arith.mulf %58, %64 : vector<8x128xf32>
    %c3_i32 = arith.constant 3 : i32
    %66 = arith.index_cast %c3_i32 : i32 to index
    %c0_14 = arith.constant 0 : index
    %c0_15 = arith.constant 0 : index
    %67 = vector.load %arg1[%66, %c0_14, %c0_15] : memref<8x8x512xf32, #tpu.memory_space<vmem>>, vector<1x8x512xf32>
    %68 = vector.shape_cast %67 : vector<1x8x512xf32> to vector<8x512xf32>
    %cst_16 = arith.constant dense<0.000000e+00> : vector<8x512xf32>
    %69 = tpu.matmul %65, %0, %cst_16 {dimension_numbers = #tpu.dot_dimension_numbers<[1], [0], [0], [1], [0, 0, 1, 1], [], []>} : vector<8x128xf32>, vector<128x512xf32>, vector<8x512xf32> -> vector<8x512xf32>
    %70 = arith.addf %68, %69 : vector<8x512xf32>
    %71 = vector.extract_strided_slice %70 {offsets = [0, 0], sizes = [8, 384], strides = [1, 1]} : vector<8x512xf32> to vector<8x384xf32>
    %72 = arith.negf %71 : vector<8x384xf32>
    %73 = math.exp %72 : vector<8x384xf32>
    %cst_17 = arith.constant 1.000000e+00 : f32
    %74 = vector.broadcast %cst_17 : f32 to vector<8x384xf32>
    %75 = arith.addf %74, %73 : vector<8x384xf32>
    %76 = arith.divf %74, %75 : vector<8x384xf32>
    %77 = vector.extract_strided_slice %76 {offsets = [0, 0], sizes = [8, 128], strides = [1, 1]} : vector<8x384xf32> to vector<8x128xf32>
    %78 = vector.extract_strided_slice %76 {offsets = [0, 128], sizes = [8, 128], strides = [1, 1]} : vector<8x384xf32> to vector<8x128xf32>
    %79 = vector.extract_strided_slice %76 {offsets = [0, 256], sizes = [8, 128], strides = [1, 1]} : vector<8x384xf32> to vector<8x128xf32>
    %80 = vector.extract_strided_slice %70 {offsets = [0, 384], sizes = [8, 128], strides = [1, 1]} : vector<8x512xf32> to vector<8x128xf32>
    %81 = math.tanh %80 : vector<8x128xf32>
    %82 = arith.mulf %78, %63 : vector<8x128xf32>
    %83 = arith.mulf %77, %81 : vector<8x128xf32>
    %84 = arith.addf %82, %83 : vector<8x128xf32>
    %85 = math.tanh %84 : vector<8x128xf32>
    %86 = arith.mulf %79, %85 : vector<8x128xf32>
    %c4_i32 = arith.constant 4 : i32
    %87 = arith.index_cast %c4_i32 : i32 to index
    %c0_18 = arith.constant 0 : index
    %c0_19 = arith.constant 0 : index
    %88 = vector.load %arg1[%87, %c0_18, %c0_19] : memref<8x8x512xf32, #tpu.memory_space<vmem>>, vector<1x8x512xf32>
    %89 = vector.shape_cast %88 : vector<1x8x512xf32> to vector<8x512xf32>
    %cst_20 = arith.constant dense<0.000000e+00> : vector<8x512xf32>
    %90 = tpu.matmul %86, %0, %cst_20 {dimension_numbers = #tpu.dot_dimension_numbers<[1], [0], [0], [1], [0, 0, 1, 1], [], []>} : vector<8x128xf32>, vector<128x512xf32>, vector<8x512xf32> -> vector<8x512xf32>
    %91 = arith.addf %89, %90 : vector<8x512xf32>
    %92 = vector.extract_strided_slice %91 {offsets = [0, 0], sizes = [8, 384], strides = [1, 1]} : vector<8x512xf32> to vector<8x384xf32>
    %93 = arith.negf %92 : vector<8x384xf32>
    %94 = math.exp %93 : vector<8x384xf32>
    %cst_21 = arith.constant 1.000000e+00 : f32
    %95 = vector.broadcast %cst_21 : f32 to vector<8x384xf32>
    %96 = arith.addf %95, %94 : vector<8x384xf32>
    %97 = arith.divf %95, %96 : vector<8x384xf32>
    %98 = vector.extract_strided_slice %97 {offsets = [0, 0], sizes = [8, 128], strides = [1, 1]} : vector<8x384xf32> to vector<8x128xf32>
    %99 = vector.extract_strided_slice %97 {offsets = [0, 128], sizes = [8, 128], strides = [1, 1]} : vector<8x384xf32> to vector<8x128xf32>
    %100 = vector.extract_strided_slice %97 {offsets = [0, 256], sizes = [8, 128], strides = [1, 1]} : vector<8x384xf32> to vector<8x128xf32>
    %101 = vector.extract_strided_slice %91 {offsets = [0, 384], sizes = [8, 128], strides = [1, 1]} : vector<8x512xf32> to vector<8x128xf32>
    %102 = math.tanh %101 : vector<8x128xf32>
    %103 = arith.mulf %99, %84 : vector<8x128xf32>
    %104 = arith.mulf %98, %102 : vector<8x128xf32>
    %105 = arith.addf %103, %104 : vector<8x128xf32>
    %106 = math.tanh %105 : vector<8x128xf32>
    %107 = arith.mulf %100, %106 : vector<8x128xf32>
    %c5_i32 = arith.constant 5 : i32
    %108 = arith.index_cast %c5_i32 : i32 to index
    %c0_22 = arith.constant 0 : index
    %c0_23 = arith.constant 0 : index
    %109 = vector.load %arg1[%108, %c0_22, %c0_23] : memref<8x8x512xf32, #tpu.memory_space<vmem>>, vector<1x8x512xf32>
    %110 = vector.shape_cast %109 : vector<1x8x512xf32> to vector<8x512xf32>
    %cst_24 = arith.constant dense<0.000000e+00> : vector<8x512xf32>
    %111 = tpu.matmul %107, %0, %cst_24 {dimension_numbers = #tpu.dot_dimension_numbers<[1], [0], [0], [1], [0, 0, 1, 1], [], []>} : vector<8x128xf32>, vector<128x512xf32>, vector<8x512xf32> -> vector<8x512xf32>
    %112 = arith.addf %110, %111 : vector<8x512xf32>
    %113 = vector.extract_strided_slice %112 {offsets = [0, 0], sizes = [8, 384], strides = [1, 1]} : vector<8x512xf32> to vector<8x384xf32>
    %114 = arith.negf %113 : vector<8x384xf32>
    %115 = math.exp %114 : vector<8x384xf32>
    %cst_25 = arith.constant 1.000000e+00 : f32
    %116 = vector.broadcast %cst_25 : f32 to vector<8x384xf32>
    %117 = arith.addf %116, %115 : vector<8x384xf32>
    %118 = arith.divf %116, %117 : vector<8x384xf32>
    %119 = vector.extract_strided_slice %118 {offsets = [0, 0], sizes = [8, 128], strides = [1, 1]} : vector<8x384xf32> to vector<8x128xf32>
    %120 = vector.extract_strided_slice %118 {offsets = [0, 128], sizes = [8, 128], strides = [1, 1]} : vector<8x384xf32> to vector<8x128xf32>
    %121 = vector.extract_strided_slice %118 {offsets = [0, 256], sizes = [8, 128], strides = [1, 1]} : vector<8x384xf32> to vector<8x128xf32>
    %122 = vector.extract_strided_slice %112 {offsets = [0, 384], sizes = [8, 128], strides = [1, 1]} : vector<8x512xf32> to vector<8x128xf32>
    %123 = math.tanh %122 : vector<8x128xf32>
    %124 = arith.mulf %120, %105 : vector<8x128xf32>
    %125 = arith.mulf %119, %123 : vector<8x128xf32>
    %126 = arith.addf %124, %125 : vector<8x128xf32>
    %127 = math.tanh %126 : vector<8x128xf32>
    %128 = arith.mulf %121, %127 : vector<8x128xf32>
    %c6_i32 = arith.constant 6 : i32
    %129 = arith.index_cast %c6_i32 : i32 to index
    %c0_26 = arith.constant 0 : index
    %c0_27 = arith.constant 0 : index
    %130 = vector.load %arg1[%129, %c0_26, %c0_27] : memref<8x8x512xf32, #tpu.memory_space<vmem>>, vector<1x8x512xf32>
    %131 = vector.shape_cast %130 : vector<1x8x512xf32> to vector<8x512xf32>
    %cst_28 = arith.constant dense<0.000000e+00> : vector<8x512xf32>
    %132 = tpu.matmul %128, %0, %cst_28 {dimension_numbers = #tpu.dot_dimension_numbers<[1], [0], [0], [1], [0, 0, 1, 1], [], []>} : vector<8x128xf32>, vector<128x512xf32>, vector<8x512xf32> -> vector<8x512xf32>
    %133 = arith.addf %131, %132 : vector<8x512xf32>
    %134 = vector.extract_strided_slice %133 {offsets = [0, 0], sizes = [8, 384], strides = [1, 1]} : vector<8x512xf32> to vector<8x384xf32>
    %135 = arith.negf %134 : vector<8x384xf32>
    %136 = math.exp %135 : vector<8x384xf32>
    %cst_29 = arith.constant 1.000000e+00 : f32
    %137 = vector.broadcast %cst_29 : f32 to vector<8x384xf32>
    %138 = arith.addf %137, %136 : vector<8x384xf32>
    %139 = arith.divf %137, %138 : vector<8x384xf32>
    %140 = vector.extract_strided_slice %139 {offsets = [0, 0], sizes = [8, 128], strides = [1, 1]} : vector<8x384xf32> to vector<8x128xf32>
    %141 = vector.extract_strided_slice %139 {offsets = [0, 128], sizes = [8, 128], strides = [1, 1]} : vector<8x384xf32> to vector<8x128xf32>
    %142 = vector.extract_strided_slice %139 {offsets = [0, 256], sizes = [8, 128], strides = [1, 1]} : vector<8x384xf32> to vector<8x128xf32>
    %143 = vector.extract_strided_slice %133 {offsets = [0, 384], sizes = [8, 128], strides = [1, 1]} : vector<8x512xf32> to vector<8x128xf32>
    %144 = math.tanh %143 : vector<8x128xf32>
    %145 = arith.mulf %141, %126 : vector<8x128xf32>
    %146 = arith.mulf %140, %144 : vector<8x128xf32>
    %147 = arith.addf %145, %146 : vector<8x128xf32>
    %148 = math.tanh %147 : vector<8x128xf32>
    %149 = arith.mulf %142, %148 : vector<8x128xf32>
    %c7_i32 = arith.constant 7 : i32
    %150 = arith.index_cast %c7_i32 : i32 to index
    %c0_30 = arith.constant 0 : index
    %c0_31 = arith.constant 0 : index
    %151 = vector.load %arg1[%150, %c0_30, %c0_31] : memref<8x8x512xf32, #tpu.memory_space<vmem>>, vector<1x8x512xf32>
    %152 = vector.shape_cast %151 : vector<1x8x512xf32> to vector<8x512xf32>
    %cst_32 = arith.constant dense<0.000000e+00> : vector<8x512xf32>
    %153 = tpu.matmul %149, %0, %cst_32 {dimension_numbers = #tpu.dot_dimension_numbers<[1], [0], [0], [1], [0, 0, 1, 1], [], []>} : vector<8x128xf32>, vector<128x512xf32>, vector<8x512xf32> -> vector<8x512xf32>
    %154 = arith.addf %152, %153 : vector<8x512xf32>
    %155 = vector.extract_strided_slice %154 {offsets = [0, 0], sizes = [8, 384], strides = [1, 1]} : vector<8x512xf32> to vector<8x384xf32>
    %156 = arith.negf %155 : vector<8x384xf32>
    %157 = math.exp %156 : vector<8x384xf32>
    %cst_33 = arith.constant 1.000000e+00 : f32
    %158 = vector.broadcast %cst_33 : f32 to vector<8x384xf32>
    %159 = arith.addf %158, %157 : vector<8x384xf32>
    %160 = arith.divf %158, %159 : vector<8x384xf32>
    %161 = vector.extract_strided_slice %160 {offsets = [0, 0], sizes = [8, 128], strides = [1, 1]} : vector<8x384xf32> to vector<8x128xf32>
    %162 = vector.extract_strided_slice %160 {offsets = [0, 128], sizes = [8, 128], strides = [1, 1]} : vector<8x384xf32> to vector<8x128xf32>
    %163 = vector.extract_strided_slice %160 {offsets = [0, 256], sizes = [8, 128], strides = [1, 1]} : vector<8x384xf32> to vector<8x128xf32>
    %164 = vector.extract_strided_slice %154 {offsets = [0, 384], sizes = [8, 128], strides = [1, 1]} : vector<8x512xf32> to vector<8x128xf32>
    %165 = math.tanh %164 : vector<8x128xf32>
    %166 = arith.mulf %162, %147 : vector<8x128xf32>
    %167 = arith.mulf %161, %165 : vector<8x128xf32>
    %168 = arith.addf %166, %167 : vector<8x128xf32>
    %169 = math.tanh %168 : vector<8x128xf32>
    %170 = arith.mulf %163, %169 : vector<8x128xf32>
    %c8_i32 = arith.constant 8 : i32
    %c0_34 = arith.constant 0 : index
    %c0_35 = arith.constant 0 : index
    %171 = vector.load %arg3[%c0_34, %c0_35] : memref<128x128xf32, #tpu.memory_space<vmem>>, vector<128x128xf32>
    %cst_36 = arith.constant dense<0.000000e+00> : vector<8x128xf32>
    %172 = tpu.matmul %170, %171, %cst_36 {dimension_numbers = #tpu.dot_dimension_numbers<[1], [0], [0], [1], [0, 0, 1, 1], [], []>} : vector<8x128xf32>, vector<128x128xf32>, vector<8x128xf32> -> vector<8x128xf32>
    %c0_37 = arith.constant 0 : index
    %c0_38 = arith.constant 0 : index
    %173 = vector.load %arg4[%c0_37, %c0_38] : memref<1x128xf32, #tpu.memory_space<vmem>>, vector<1x128xf32>
    %174 = vector.broadcast %173 : vector<1x128xf32> to vector<8x128xf32>
    %175 = arith.addf %172, %174 : vector<8x128xf32>
    %c0_39 = arith.constant 0 : index
    %c0_40 = arith.constant 0 : index
    %176 = vector.load %arg5[%c0_39, %c0_40] : memref<8x128xf32, #tpu.memory_space<vmem>>, vector<8x128xf32>
    tpu.vector_store %arg5[%c0_39, %c0_40], %175 {strides = array<i32>} : memref<8x128xf32, #tpu.memory_space<vmem>>, vector<8x128xf32>,
    return
  }
  func.func @transform_0(%arg0: i32) -> (i32, i32, i32) {
    %c0_i32 = arith.constant 0 : i32
    %c0_i32_0 = arith.constant 0 : i32
    %c0_i32_1 = arith.constant 0 : i32
    return %c0_i32, %arg0, %c0_i32_0 : i32, i32, i32
  }
  func.func @transform_1(%arg0: i32) -> (i32, i32) {
    %c0_i32 = arith.constant 0 : i32
    %c0_i32_0 = arith.constant 0 : i32
    %c0_i32_1 = arith.constant 0 : i32
    return %c0_i32, %c0_i32_0 : i32, i32
  }
  func.func @transform_2(%arg0: i32) -> (i32, i32) {
    %c0_i32 = arith.constant 0 : i32
    %c0_i32_0 = arith.constant 0 : i32
    %c0_i32_1 = arith.constant 0 : i32
    return %c0_i32, %c0_i32_0 : i32, i32
  }
  func.func @transform_3(%arg0: i32) -> (i32, i32) {
    %c0_i32 = arith.constant 0 : i32
    %c0_i32_0 = arith.constant 0 : i32
    %c0_i32_1 = arith.constant 0 : i32
    return %c0_i32, %c0_i32_0 : i32, i32
  }
  func.func @transform_4(%arg0: i32) -> (i32, i32) {
    %c0_i32 = arith.constant 0 : i32
    %c0_i32_0 = arith.constant 0 : i32
    return %arg0, %c0_i32 : i32, i32
  }
}

</mosaic_0001>

<llo_original>
// kernel: tpu_custom_call.1
$region0: #{tpu_custom_call.1}
  #allocation0 [shape = 'u32[]', space=smem, size = 0x4, offset = 0x4, fixed_abs, tag = 'smem constant byte address 0x4 - core index']
  #allocation1 [shape = 'u32[72,128]{1,0:T(1,128)}', space=vmem, size = 0x9000, scoped, tag = 'internal scratch']
  %s0 = inlined_call_operand.hbm [shape: f32[8,8,512], index: 0, kind: input, shape index: {}]
  %s1 = inlined_call_operand.hbm [shape: f32[128,512], index: 1, kind: input, shape index: {}]
  %s2 = inlined_call_operand.hbm [shape: f32[128,128], index: 2, kind: input, shape index: {}]
  %s3 = inlined_call_operand.vmem [shape: f32[1,128], index: 3, kind: input, shape index: {}]
  %s4 = inlined_call_operand.hbm [shape: f32[8,128], index: 4, kind: output, shape index: {}]
  %s5 = sld [smem:[#allocation0]]
  $region38: #{tpu_custom_call.1} parent=0
    _
  %s7 = ssub.s32 1, %s5
  %s8 = scalar_select 0, %s7, %s5
  $region1: #{tpu_custom_call.1} parent=0
    #allocation2 [shape = 'u8[131072]{0}', space=vmem, size = 0x20000, scoped, tag = 'input window, operand 0, single buffered']
    #allocation3 [shape = 's32[1]{0}', space=sflag, size = 0x4, scoped, tag = 'scoped memory for tpu_custom_call.1']
    #allocation4 [shape = 's32[1]{0}', space=sflag, size = 0x4, scoped, tag = 'scoped memory for tpu_custom_call.1']
    #allocation5 [shape = 'u8[262144]{0}', space=vmem, size = 0x40000, scoped, tag = 'input window, operand 1, single buffered']
    #allocation6 [shape = 's32[1]{0}', space=sflag, size = 0x4, scoped, tag = 'scoped memory for tpu_custom_call.1']
    #allocation7 [shape = 'u8[65536]{0}', space=vmem, size = 0x10000, scoped, tag = 'input window, operand 2, single buffered']
    #allocation8 [shape = 'u8[4096]{0}', space=vmem, size = 0x1000, scoped, tag = 'output window, operand 0, single buffered']
    %9 = vsyncpa [#allocation3], 0
    %10 = vsyncpa [#allocation6], 0
    %11 = vsyncpa [#allocation4], 0
    // Predicated region
    $region2: #{tpu_custom_call.1} parent=1 // pred_check
      _
    $region3: #{tpu_custom_call.1} parent=1 // pred_check_branch
      %13 = sbr.rel (0) target = $region5
    $region4: #{tpu_custom_call.1} parent=1 // pred_region
      %15 = vsyncadd [#allocation3], 0
      %s16 = sshll.u32 %s0, 4
      %s17 = int_to_ptr.hbm [resolvable:$true] %s16
      %s18 = sshll.u32 [#allocation2], 4
      %s19 = int_to_ptr.vmem [resolvable:$true] %s18
      %24 = dma.hbm_to_vmem [thread:$0]  %s17, 4096, %s19, [#allocation3], 512, 512, 32
    $region5: #{tpu_custom_call.1} parent=1 // pred_fallthru
      _
    // Predicated region
    $region6: #{tpu_custom_call.1} parent=1 // pred_check
      _
    $region7: #{tpu_custom_call.1} parent=1 // pred_check_branch
      %26 = sbr.rel (0) target = $region9
    $region8: #{tpu_custom_call.1} parent=1 // pred_region
      %28 = vsyncadd [#allocation6], 0
      %s29 = sshll.u32 %s1, 4
      %s30 = int_to_ptr.hbm [resolvable:$true] %s29
      %s31 = sshll.u32 [#allocation5], 4
      %s32 = int_to_ptr.vmem [resolvable:$true] %s31
      %37 = dma.hbm_to_vmem [thread:$0]  %s30, 8192, %s32, [#allocation6], 512, 512, 32
    $region9: #{tpu_custom_call.1} parent=1 // pred_fallthru
      _
    // Predicated region
    $region10: #{tpu_custom_call.1} parent=1 // pred_check
      _
    $region11: #{tpu_custom_call.1} parent=1 // pred_check_branch
      %39 = sbr.rel (0) target = $region13
    $region12: #{tpu_custom_call.1} parent=1 // pred_region
      %41 = vsyncadd [#allocation6], 0
      %s42 = sshll.u32 %s2, 4
      %s43 = int_to_ptr.hbm [resolvable:$true] %s42
      %s44 = sshll.u32 [#allocation7], 4
      %s45 = int_to_ptr.vmem [resolvable:$true] %s44
      %50 = dma.hbm_to_vmem [thread:$0]  %s43, 2048, %s45, [#allocation6], 128, 128, 8
    $region13: #{tpu_custom_call.1} parent=1 // pred_fallthru
      _
    // Predicated region
    $region14: #{tpu_custom_call.1} parent=1 // pred_check
      _
    $region15: #{tpu_custom_call.1} parent=1 // pred_check_branch
      %52 = sbr.rel (0) target = $region17
    $region16: #{tpu_custom_call.1} parent=1 // pred_region
      _
    $region17: #{tpu_custom_call.1} parent=1 // pred_fallthru
      _
    // Predicated region
    $region18: #{tpu_custom_call.1} parent=1 // pred_check
      _
    $region19: #{tpu_custom_call.1} parent=1 // pred_check_branch
      %54 = sbr.rel (0) target = $region21
    $region20: #{tpu_custom_call.1} parent=1 // pred_region
      %56 = dma.done [#allocation3], 4096
    $region21: #{tpu_custom_call.1} parent=1 // pred_fallthru
      _
    // Predicated region
    $region22: #{tpu_custom_call.1} parent=1 // pred_check
      _
    $region23: #{tpu_custom_call.1} parent=1 // pred_check_branch
      %58 = sbr.rel (0) target = $region25
    $region24: #{tpu_custom_call.1} parent=1 // pred_region
      %60 = dma.done [#allocation6], 8192
    $region25: #{tpu_custom_call.1} parent=1 // pred_fallthru
      _
    // Predicated region
    $region26: #{tpu_custom_call.1} parent=1 // pred_check
      _
    $region27: #{tpu_custom_call.1} parent=1 // pred_check_branch
      %62 = sbr.rel (0) target = $region29
    $region28: #{tpu_custom_call.1} parent=1 // pred_region
      %64 = dma.done [#allocation6], 2048
    $region29: #{tpu_custom_call.1} parent=1 // pred_fallthru
      _
    %v65 = vld [vmem:[#allocation5] sm:$0xff]
    %v66 = vld [vmem:[#allocation5 + $0x8] sm:$0xff]
    %v67 = vld [vmem:[#allocation5 + $0x10] sm:$0xff]
    %v68 = vld [vmem:[#allocation5 + $0x18] sm:$0xff]
    %v69 = vld [vmem:[#allocation5 + $0x20] sm:$0xff]
    %v70 = vld [vmem:[#allocation5 + $0x28] sm:$0xff]
    %v71 = vld [vmem:[#allocation5 + $0x30] sm:$0xff]
    %v72 = vld [vmem:[#allocation5 + $0x38] sm:$0xff]
    %v73 = vld [vmem:[#allocation5 + $0x40] sm:$0xff]
    %v74 = vld [vmem:[#allocation5 + $0x48] sm:$0xff]
    %v75 = vld [vmem:[#allocation5 + $0x50] sm:$0xff]
    %v76 = vld [vmem:[#allocation5 + $0x58] sm:$0xff]
    %v77 = vld [vmem:[#allocation5 + $0x60] sm:$0xff]
    %v78 = vld [vmem:[#allocation5 + $0x68] sm:$0xff]
    %v79 = vld [vmem:[#allocation5 + $0x70] sm:$0xff]
    %v80 = vld [vmem:[#allocation5 + $0x78] sm:$0xff]
    %v81 = vld [vmem:[#allocation5 + $0x80] sm:$0xff]
    %v82 = vld [vmem:[#allocation5 + $0x88] sm:$0xff]
    %v83 = vld [vmem:[#allocation5 + $0x90] sm:$0xff]
    %v84 = vld [vmem:[#allocation5 + $0x98] sm:$0xff]
    %v85 = vld [vmem:[#allocation5 + $0xa0] sm:$0xff]
    %v86 = vld [vmem:[#allocation5 + $0xa8] sm:$0xff]
    %v87 = vld [vmem:[#allocation5 + $0xb0] sm:$0xff]
    %v88 = vld [vmem:[#allocation5 + $0xb8] sm:$0xff]
    %v89 = vld [vmem:[#allocation5 + $0xc0] sm:$0xff]
    %v90 = vld [vmem:[#allocation5 + $0xc8] sm:$0xff]
    %v91 = vld [vmem:[#allocation5 + $0xd0] sm:$0xff]
    %v92 = vld [vmem:[#allocation5 + $0xd8] sm:$0xff]
    %v93 = vld [vmem:[#allocation5 + $0xe0] sm:$0xff]
    %v94 = vld [vmem:[#allocation5 + $0xe8] sm:$0xff]
    %v95 = vld [vmem:[#allocation5 + $0xf0] sm:$0xff]
    %v96 = vld [vmem:[#allocation5 + $0xf8] sm:$0xff]
    %v97 = vld [vmem:[#allocation5 + $0x100] sm:$0xff]
    %v98 = vld [vmem:[#allocation5 + $0x108] sm:$0xff]
    %v99 = vld [vmem:[#allocation5 + $0x110] sm:$0xff]
    %v100 = vld [vmem:[#allocation5 + $0x118] sm:$0xff]
    %v101 = vld [vmem:[#allocation5 + $0x120] sm:$0xff]
    %v102 = vld [vmem:[#allocation5 + $0x128] sm:$0xff]
    %v103 = vld [vmem:[#allocation5 + $0x130] sm:$0xff]
    %v104 = vld [vmem:[#allocation5 + $0x138] sm:$0xff]
    %v105 = vld [vmem:[#allocation5 + $0x140] sm:$0xff]
    %v106 = vld [vmem:[#allocation5 + $0x148] sm:$0xff]
    %v107 = vld [vmem:[#allocation5 + $0x150] sm:$0xff]
    %v108 = vld [vmem:[#allocation5 + $0x158] sm:$0xff]
    %v109 = vld [vmem:[#allocation5 + $0x160] sm:$0xff]
    %v110 = vld [vmem:[#allocation5 + $0x168] sm:$0xff]
    %v111 = vld [vmem:[#allocation5 + $0x170] sm:$0xff]
    %v112 = vld [vmem:[#allocation5 + $0x178] sm:$0xff]
    %v113 = vld [vmem:[#allocation5 + $0x180] sm:$0xff]
    %v114 = vld [vmem:[#allocation5 + $0x188] sm:$0xff]
    %v115 = vld [vmem:[#allocation5 + $0x190] sm:$0xff]
    %v116 = vld [vmem:[#allocation5 + $0x198] sm:$0xff]
    %v117 = vld [vmem:[#allocation5 + $0x1a0] sm:$0xff]
    %v118 = vld [vmem:[#allocation5 + $0x1a8] sm:$0xff]
    %v119 = vld [vmem:[#allocation5 + $0x1b0] sm:$0xff]
    %v120 = vld [vmem:[#allocation5 + $0x1b8] sm:$0xff]
    %v121 = vld [vmem:[#allocation5 + $0x1c0] sm:$0xff]
    %v122 = vld [vmem:[#allocation5 + $0x1c8] sm:$0xff]
    %v123 = vld [vmem:[#allocation5 + $0x1d0] sm:$0xff]
    %v124 = vld [vmem:[#allocation5 + $0x1d8] sm:$0xff]
    %v125 = vld [vmem:[#allocation5 + $0x1e0] sm:$0xff]
    %v126 = vld [vmem:[#allocation5 + $0x1e8] sm:$0xff]
    %v127 = vld [vmem:[#allocation5 + $0x1f0] sm:$0xff]
    %v128 = vld [vmem:[#allocation5 + $0x1f8] sm:$0xff]
    %v129 = vld [vmem:[#allocation2] sm:$0xff]
    %v130 = vld [vmem:[#allocation2 + $0x8] sm:$0xff]
    %v131 = vld [vmem:[#allocation2 + $0x10] sm:$0xff]
    %v132 = vld [vmem:[#allocation2 + $0x18] sm:$0xff]
    %133 = vmatpush.msra.mxu0 %v125
    %134 = vmatpush.msra.mxu0 %v121
    %135 = vmatpush.msra.mxu0 %v117
    %136 = vmatpush.msra.mxu0 %v113
    %137 = vmatpush.msra.mxu0 %v109
    %138 = vmatpush.msra.mxu0 %v105
    %139 = vmatpush.msra.mxu0 %v101
    %140 = vmatpush.msra.mxu0 %v97
    %141 = vmatpush.msra.mxu0 %v93
    %142 = vmatpush.msra.mxu0 %v89
    %143 = vmatpush.msra.mxu0 %v85
    %144 = vmatpush.msra.mxu0 %v81
    %145 = vmatpush.msra.mxu0 %v77
    %146 = vmatpush.msra.mxu0 %v73
    %147 = vmatpush.msra.mxu0 %v69
    %148 = vmatpush.msra.mxu0 %v65
    %149 = vmatmul.f32.gmra.mxu0 0.0
    %v150 = vpop.f32.mrf.mxu0
    %v151 = vadd.f32 0.0, %v150
    %152 = vdwg.mxu0
    %153 = vmatpush.msra.mxu0 %v126
    %154 = vmatpush.msra.mxu0 %v122
    %155 = vmatpush.msra.mxu0 %v118
    %156 = vmatpush.msra.mxu0 %v114
    %157 = vmatpush.msra.mxu0 %v110
    %158 = vmatpush.msra.mxu0 %v106
    %159 = vmatpush.msra.mxu0 %v102
    %160 = vmatpush.msra.mxu0 %v98
    %161 = vmatpush.msra.mxu0 %v94
    %162 = vmatpush.msra.mxu0 %v90
    %163 = vmatpush.msra.mxu0 %v86
    %164 = vmatpush.msra.mxu0 %v82
    %165 = vmatpush.msra.mxu0 %v78
    %166 = vmatpush.msra.mxu0 %v74
    %167 = vmatpush.msra.mxu0 %v70
    %168 = vmatpush.msra.mxu0 %v66
    %169 = vmatmul.f32.gmra.mxu0 0.0
    %v170 = vpop.f32.mrf.mxu0
    %v171 = vadd.f32 0.0, %v170
    %172 = vdwg.mxu0
    %173 = vmatpush.msra.mxu0 %v127
    %174 = vmatpush.msra.mxu0 %v123
    %175 = vmatpush.msra.mxu0 %v119
    %176 = vmatpush.msra.mxu0 %v115
    %177 = vmatpush.msra.mxu0 %v111
    %178 = vmatpush.msra.mxu0 %v107
    %179 = vmatpush.msra.mxu0 %v103
    %180 = vmatpush.msra.mxu0 %v99
    %181 = vmatpush.msra.mxu0 %v95
    %182 = vmatpush.msra.mxu0 %v91
    %183 = vmatpush.msra.mxu0 %v87
    %184 = vmatpush.msra.mxu0 %v83
    %185 = vmatpush.msra.mxu0 %v79
    %186 = vmatpush.msra.mxu0 %v75
    %187 = vmatpush.msra.mxu0 %v71
    %188 = vmatpush.msra.mxu0 %v67
    %189 = vmatmul.f32.gmra.mxu0 0.0
    %v190 = vpop.f32.mrf.mxu0
    %v191 = vadd.f32 0.0, %v190
    %192 = vdwg.mxu0
    %193 = vmatpush.msra.mxu0 %v128
    %194 = vmatpush.msra.mxu0 %v124
    %195 = vmatpush.msra.mxu0 %v120
    %196 = vmatpush.msra.mxu0 %v116
    %197 = vmatpush.msra.mxu0 %v112
    %198 = vmatpush.msra.mxu0 %v108
    %199 = vmatpush.msra.mxu0 %v104
    %200 = vmatpush.msra.mxu0 %v100
    %201 = vmatpush.msra.mxu0 %v96
    %202 = vmatpush.msra.mxu0 %v92
    %203 = vmatpush.msra.mxu0 %v88
    %204 = vmatpush.msra.mxu0 %v84
    %205 = vmatpush.msra.mxu0 %v80
    %206 = vmatpush.msra.mxu0 %v76
    %207 = vmatpush.msra.mxu0 %v72
    %208 = vmatpush.msra.mxu0 %v68
    %209 = vmatmul.f32.gmra.mxu0 0.0
    %v210 = vpop.f32.mrf.mxu0
    %v211 = vadd.f32 0.0, %v210
    %212 = vdwg.mxu0
    %v213 = vadd.f32 %v129, %v151
    %v214 = vadd.f32 %v130, %v171
    %v215 = vadd.f32 %v131, %v191
    %v216 = vadd.f32 %v132, %v211
    %v217 = vxor.u32 %v213, 2147483648
    %v218 = vxor.u32 %v214, 2147483648
    %v219 = vxor.u32 %v215, 2147483648
    %v220 = vmul.f32 %v217, 1.442695
    %v221 = vpow.pop %v220
    %v222 = vmul.f32 %v218, 1.442695
    %v223 = vpow.pop %v222
    %v224 = vmul.f32 %v219, 1.442695
    %v225 = vpow.pop %v224
    %v226 = vadd.f32 %v221, 1.0
    %v227 = vadd.f32 %v223, 1.0
    %v228 = vadd.f32 %v225, 1.0
    %v229 = vrcp.pop %v226
    %v230 = vmul.f32 %v226, %v229
    %v231 = vsub.f32 1.0, %v230
    %v232 = vmul.f32 %v229, %v231
    %v233 = vadd.f32 %v229, %v232
    %vm234 = vweird.f32 %v226
    %vm235 = vweird.f32 %v229
    %vm236 = vmor %vm234, %vm235
    %v237 = vsel %vm236, %v229, %v233
    %v238 = vand.u32 2147483647, %v226
    %vm239 = vcmp.eq.f32.partialorder %v238, 8.507059e+37
    %v240 = vand.u32 %v226, 2147483648
    %v241 = vor.u32 1.1754944e-38, %v240
    %v242 = vsel %vm239, %v241, %v237
    %v243 = vmul.f32 1.0, %v242
    %v244 = vrcp.pop %v227
    %v245 = vmul.f32 %v227, %v244
    %v246 = vsub.f32 1.0, %v245
    %v247 = vmul.f32 %v244, %v246
    %v248 = vadd.f32 %v244, %v247
    %vm249 = vweird.f32 %v227
    %vm250 = vweird.f32 %v244
    %vm251 = vmor %vm249, %vm250
    %v252 = vsel %vm251, %v244, %v248
    %v253 = vand.u32 2147483647, %v227
    %vm254 = vcmp.eq.f32.partialorder %v253, 8.507059e+37
    %v255 = vand.u32 %v227, 2147483648
    %v256 = vor.u32 1.1754944e-38, %v255
    %v257 = vsel %vm254, %v256, %v252
    %v258 = vmul.f32 1.0, %v257
    %v259 = vrcp.pop %v228
    %v260 = vmul.f32 %v228, %v259
    %v261 = vsub.f32 1.0, %v260
    %v262 = vmul.f32 %v259, %v261
    %v263 = vadd.f32 %v259, %v262
    %vm264 = vweird.f32 %v228
    %vm265 = vweird.f32 %v259
    %vm266 = vmor %vm264, %vm265
    %v267 = vsel %vm266, %v259, %v263
    %v268 = vand.u32 2147483647, %v228
    %vm269 = vcmp.eq.f32.partialorder %v268, 8.507059e+37
    %v270 = vand.u32 %v228, 2147483648
    %v271 = vor.u32 1.1754944e-38, %v270
    %v272 = vsel %vm269, %v271, %v267
    %v273 = vmul.f32 1.0, %v272
    %v274 = vtanh.pop %v216
    %v275 = vmul.f32 %v258, 0.0
    %v276 = vmul.f32 %v243, %v274
    %v277 = vadd.f32 %v275, %v276
    %v278 = vtanh.pop %v277
    %v279 = vmul.f32 %v273, %v278
    %s280 = scalar_lea.vmem [#allocation2], 32
    %v281 = vld [vmem:[%s280] sm:$0xff]
    %v282 = vld [vmem:[%s280 + $0x8] sm:$0xff]
    %v283 = vld [vmem:[%s280 + $0x10] sm:$0xff]
    %v284 = vld [vmem:[%s280 + $0x18] sm:$0xff]
    %285 = vmatpush.msra.mxu0 %v125
    %286 = vmatpush.msra.mxu0 %v121
    %287 = vmatpush.msra.mxu0 %v117
    %288 = vmatpush.msra.mxu0 %v113
    %289 = vmatpush.msra.mxu0 %v109
    %290 = vmatpush.msra.mxu0 %v105
    %291 = vmatpush.msra.mxu0 %v101
    %292 = vmatpush.msra.mxu0 %v97
    %293 = vmatpush.msra.mxu0 %v93
    %294 = vmatpush.msra.mxu0 %v89
    %295 = vmatpush.msra.mxu0 %v85
    %296 = vmatpush.msra.mxu0 %v81
    %297 = vmatpush.msra.mxu0 %v77
    %298 = vmatpush.msra.mxu0 %v73
    %299 = vmatpush.msra.mxu0 %v69
    %300 = vmatpush.msra.mxu0 %v65
    %301 = vmatmul.f32.gmra.mxu0 %v279
    %v302 = vpop.f32.mrf.mxu0
    %v303 = vadd.f32 0.0, %v302
    %304 = vdwg.mxu0
    %305 = vmatpush.msra.mxu0 %v126
    %306 = vmatpush.msra.mxu0 %v122
    %307 = vmatpush.msra.mxu0 %v118
    %308 = vmatpush.msra.mxu0 %v114
    %309 = vmatpush.msra.mxu0 %v110
    %310 = vmatpush.msra.mxu0 %v106
    %311 = vmatpush.msra.mxu0 %v102
    %312 = vmatpush.msra.mxu0 %v98
    %313 = vmatpush.msra.mxu0 %v94
    %314 = vmatpush.msra.mxu0 %v90
    %315 = vmatpush.msra.mxu0 %v86
    %316 = vmatpush.msra.mxu0 %v82
    %317 = vmatpush.msra.mxu0 %v78
    %318 = vmatpush.msra.mxu0 %v74
    %319 = vmatpush.msra.mxu0 %v70
    %320 = vmatpush.msra.mxu0 %v66
    %321 = vmatmul.f32.gmra.mxu0 %v279
    %v322 = vpop.f32.mrf.mxu0
    %v323 = vadd.f32 0.0, %v322
    %324 = vdwg.mxu0
    %325 = vmatpush.msra.mxu0 %v127
    %326 = vmatpush.msra.mxu0 %v123
    %327 = vmatpush.msra.mxu0 %v119
    %328 = vmatpush.msra.mxu0 %v115
    %329 = vmatpush.msra.mxu0 %v111
    %330 = vmatpush.msra.mxu0 %v107
    %331 = vmatpush.msra.mxu0 %v103
    %332 = vmatpush.msra.mxu0 %v99
    %333 = vmatpush.msra.mxu0 %v95
    %334 = vmatpush.msra.mxu0 %v91
    %335 = vmatpush.msra.mxu0 %v87
    %336 = vmatpush.msra.mxu0 %v83
    %337 = vmatpush.msra.mxu0 %v79
    %338 = vmatpush.msra.mxu0 %v75
    %339 = vmatpush.msra.mxu0 %v71
    %340 = vmatpush.msra.mxu0 %v67
    %341 = vmatmul.f32.gmra.mxu0 %v279
    %v342 = vpop.f32.mrf.mxu0
    %v343 = vadd.f32 0.0, %v342
    %344 = vdwg.mxu0
    %345 = vmatpush.msra.mxu0 %v128
    %346 = vmatpush.msra.mxu0 %v124
    %347 = vmatpush.msra.mxu0 %v120
    %348 = vmatpush.msra.mxu0 %v116
    %349 = vmatpush.msra.mxu0 %v112
    %350 = vmatpush.msra.mxu0 %v108
    %351 = vmatpush.msra.mxu0 %v104
    %352 = vmatpush.msra.mxu0 %v100
    %353 = vmatpush.msra.mxu0 %v96
    %354 = vmatpush.msra.mxu0 %v92
    %355 = vmatpush.msra.mxu0 %v88
    %356 = vmatpush.msra.mxu0 %v84
    %357 = vmatpush.msra.mxu0 %v80
    %358 = vmatpush.msra.mxu0 %v76
    %359 = vmatpush.msra.mxu0 %v72
    %360 = vmatpush.msra.mxu0 %v68
    %361 = vmatmul.f32.gmra.mxu0 %v279
    %v362 = vpop.f32.mrf.mxu0
    %v363 = vadd.f32 0.0, %v362
    %364 = vdwg.mxu0
    %v365 = vadd.f32 %v281, %v303
    %v366 = vadd.f32 %v282, %v323
    %v367 = vadd.f32 %v283, %v343
    %v368 = vadd.f32 %v284, %v363
    %v369 = vxor.u32 %v365, 2147483648
    %v370 = vxor.u32 %v366, 2147483648
    %v371 = vxor.u32 %v367, 2147483648
    %v372 = vmul.f32 %v369, 1.442695
    %v373 = vpow.pop %v372
    %v374 = vmul.f32 %v370, 1.442695
    %v375 = vpow.pop %v374
    %v376 = vmul.f32 %v371, 1.442695
    %v377 = vpow.pop %v376
    %v378 = vadd.f32 %v373, 1.0
    %v379 = vadd.f32 %v375, 1.0
    %v380 = vadd.f32 %v377, 1.0
    %v381 = vrcp.pop %v378
    %v382 = vmul.f32 %v378, %v381
    %v383 = vsub.f32 1.0, %v382
    %v384 = vmul.f32 %v381, %v383
    %v385 = vadd.f32 %v381, %v384
    %vm386 = vweird.f32 %v378
    %vm387 = vweird.f32 %v381
    %vm388 = vmor %vm386, %vm387
    %v389 = vsel %vm388, %v381, %v385
    %v390 = vand.u32 2147483647, %v378
    %vm391 = vcmp.eq.f32.partialorder %v390, 8.507059e+37
    %v392 = vand.u32 %v378, 2147483648
    %v393 = vor.u32 1.1754944e-38, %v392
    %v394 = vsel %vm391, %v393, %v389
    %v395 = vmul.f32 1.0, %v394
    %v396 = vrcp.pop %v379
    %v397 = vmul.f32 %v379, %v396
    %v398 = vsub.f32 1.0, %v397
    %v399 = vmul.f32 %v396, %v398
    %v400 = vadd.f32 %v396, %v399
    %vm401 = vweird.f32 %v379
    %vm402 = vweird.f32 %v396
    %vm403 = vmor %vm401, %vm402
    %v404 = vsel %vm403, %v396, %v400
    %v405 = vand.u32 2147483647, %v379
    %vm406 = vcmp.eq.f32.partialorder %v405, 8.507059e+37
    %v407 = vand.u32 %v379, 2147483648
    %v408 = vor.u32 1.1754944e-38, %v407
    %v409 = vsel %vm406, %v408, %v404
    %v410 = vmul.f32 1.0, %v409
    %v411 = vrcp.pop %v380
    %v412 = vmul.f32 %v380, %v411
    %v413 = vsub.f32 1.0, %v412
    %v414 = vmul.f32 %v411, %v413
    %v415 = vadd.f32 %v411, %v414
    %vm416 = vweird.f32 %v380
    %vm417 = vweird.f32 %v411
    %vm418 = vmor %vm416, %vm417
    %v419 = vsel %vm418, %v411, %v415
    %v420 = vand.u32 2147483647, %v380
    %vm421 = vcmp.eq.f32.partialorder %v420, 8.507059e+37
    %v422 = vand.u32 %v380, 2147483648
    %v423 = vor.u32 1.1754944e-38, %v422
    %v424 = vsel %vm421, %v423, %v419
    %v425 = vmul.f32 1.0, %v424
    %v426 = vtanh.pop %v368
    %v427 = vmul.f32 %v410, %v277
    %v428 = vmul.f32 %v395, %v426
    %v429 = vadd.f32 %v427, %v428
    %v430 = vtanh.pop %v429
    %v431 = vmul.f32 %v425, %v430
    %s432 = scalar_lea.vmem [#allocation2], 64
    %v433 = vld [vmem:[%s432] sm:$0xff]
    %v434 = vld [vmem:[%s432 + $0x8] sm:$0xff]
    %v435 = vld [vmem:[%s432 + $0x10] sm:$0xff]
    %v436 = vld [vmem:[%s432 + $0x18] sm:$0xff]
    %437 = vmatpush.msra.mxu0 %v125
    %438 = vmatpush.msra.mxu0 %v121
    %439 = vmatpush.msra.mxu0 %v117
    %440 = vmatpush.msra.mxu0 %v113
    %441 = vmatpush.msra.mxu0 %v109
    %442 = vmatpush.msra.mxu0 %v105
    %443 = vmatpush.msra.mxu0 %v101
    %444 = vmatpush.msra.mxu0 %v97
    %445 = vmatpush.msra.mxu0 %v93
    %446 = vmatpush.msra.mxu0 %v89
    %447 = vmatpush.msra.mxu0 %v85
    %448 = vmatpush.msra.mxu0 %v81
    %449 = vmatpush.msra.mxu0 %v77
    %450 = vmatpush.msra.mxu0 %v73
    %451 = vmatpush.msra.mxu0 %v69
    %452 = vmatpush.msra.mxu0 %v65
    %453 = vmatmul.f32.gmra.mxu0 %v431
    %v454 = vpop.f32.mrf.mxu0
    %v455 = vadd.f32 0.0, %v454
    %456 = vdwg.mxu0
    %457 = vmatpush.msra.mxu0 %v126
    %458 = vmatpush.msra.mxu0 %v122
    %459 = vmatpush.msra.mxu0 %v118
    %460 = vmatpush.msra.mxu0 %v114
    %461 = vmatpush.msra.mxu0 %v110
    %462 = vmatpush.msra.mxu0 %v106
    %463 = vmatpush.msra.mxu0 %v102
    %464 = vmatpush.msra.mxu0 %v98
    %465 = vmatpush.msra.mxu0 %v94
    %466 = vmatpush.msra.mxu0 %v90
    %467 = vmatpush.msra.mxu0 %v86
    %468 = vmatpush.msra.mxu0 %v82
    %469 = vmatpush.msra.mxu0 %v78
    %470 = vmatpush.msra.mxu0 %v74
    %471 = vmatpush.msra.mxu0 %v70
    %472 = vmatpush.msra.mxu0 %v66
    %473 = vmatmul.f32.gmra.mxu0 %v431
    %v474 = vpop.f32.mrf.mxu0
    %v475 = vadd.f32 0.0, %v474
    %476 = vdwg.mxu0
    %477 = vmatpush.msra.mxu0 %v127
    %478 = vmatpush.msra.mxu0 %v123
    %479 = vmatpush.msra.mxu0 %v119
    %480 = vmatpush.msra.mxu0 %v115
    %481 = vmatpush.msra.mxu0 %v111
    %482 = vmatpush.msra.mxu0 %v107
    %483 = vmatpush.msra.mxu0 %v103
    %484 = vmatpush.msra.mxu0 %v99
    %485 = vmatpush.msra.mxu0 %v95
    %486 = vmatpush.msra.mxu0 %v91
    %487 = vmatpush.msra.mxu0 %v87
    %488 = vmatpush.msra.mxu0 %v83
    %489 = vmatpush.msra.mxu0 %v79
    %490 = vmatpush.msra.mxu0 %v75
    %491 = vmatpush.msra.mxu0 %v71
    %492 = vmatpush.msra.mxu0 %v67
    %493 = vmatmul.f32.gmra.mxu0 %v431
    %v494 = vpop.f32.mrf.mxu0
    %v495 = vadd.f32 0.0, %v494
    %496 = vdwg.mxu0
    %497 = vmatpush.msra.mxu0 %v128
    %498 = vmatpush.msra.mxu0 %v124
    %499 = vmatpush.msra.mxu0 %v120
    %500 = vmatpush.msra.mxu0 %v116
    %501 = vmatpush.msra.mxu0 %v112
    %502 = vmatpush.msra.mxu0 %v108
    %503 = vmatpush.msra.mxu0 %v104
    %504 = vmatpush.msra.mxu0 %v100
    %505 = vmatpush.msra.mxu0 %v96
    %506 = vmatpush.msra.mxu0 %v92
    %507 = vmatpush.msra.mxu0 %v88
    %508 = vmatpush.msra.mxu0 %v84
    %509 = vmatpush.msra.mxu0 %v80
    %510 = vmatpush.msra.mxu0 %v76
    %511 = vmatpush.msra.mxu0 %v72
    %512 = vmatpush.msra.mxu0 %v68
    %513 = vmatmul.f32.gmra.mxu0 %v431
    %v514 = vpop.f32.mrf.mxu0
    %v515 = vadd.f32 0.0, %v514
    %516 = vdwg.mxu0
    %v517 = vadd.f32 %v433, %v455
    %v518 = vadd.f32 %v434, %v475
    %v519 = vadd.f32 %v435, %v495
    %v520 = vadd.f32 %v436, %v515
    %v521 = vxor.u32 %v517, 2147483648
    %v522 = vxor.u32 %v518, 2147483648
    %v523 = vxor.u32 %v519, 2147483648
    %v524 = vmul.f32 %v521, 1.442695
    %v525 = vpow.pop %v524
    %v526 = vmul.f32 %v522, 1.442695
    %v527 = vpow.pop %v526
    %v528 = vmul.f32 %v523, 1.442695
    %v529 = vpow.pop %v528
    %v530 = vadd.f32 %v525, 1.0
    %v531 = vadd.f32 %v527, 1.0
    %v532 = vadd.f32 %v529, 1.0
    %v533 = vrcp.pop %v530
    %v534 = vmul.f32 %v530, %v533
    %v535 = vsub.f32 1.0, %v534
    %v536 = vmul.f32 %v533, %v535
    %v537 = vadd.f32 %v533, %v536
    %vm538 = vweird.f32 %v530
    %vm539 = vweird.f32 %v533
    %vm540 = vmor %vm538, %vm539
    %v541 = vsel %vm540, %v533, %v537
    %v542 = vand.u32 2147483647, %v530
    %vm543 = vcmp.eq.f32.partialorder %v542, 8.507059e+37
    %v544 = vand.u32 %v530, 2147483648
    %v545 = vor.u32 1.1754944e-38, %v544
    %v546 = vsel %vm543, %v545, %v541
    %v547 = vmul.f32 1.0, %v546
    %v548 = vrcp.pop %v531
    %v549 = vmul.f32 %v531, %v548
    %v550 = vsub.f32 1.0, %v549
    %v551 = vmul.f32 %v548, %v550
    %v552 = vadd.f32 %v548, %v551
    %vm553 = vweird.f32 %v531
    %vm554 = vweird.f32 %v548
    %vm555 = vmor %vm553, %vm554
    %v556 = vsel %vm555, %v548, %v552
    %v557 = vand.u32 2147483647, %v531
    %vm558 = vcmp.eq.f32.partialorder %v557, 8.507059e+37
    %v559 = vand.u32 %v531, 2147483648
    %v560 = vor.u32 1.1754944e-38, %v559
    %v561 = vsel %vm558, %v560, %v556
    %v562 = vmul.f32 1.0, %v561
    %v563 = vrcp.pop %v532
    %v564 = vmul.f32 %v532, %v563
    %v565 = vsub.f32 1.0, %v564
    %v566 = vmul.f32 %v563, %v565
    %v567 = vadd.f32 %v563, %v566
    %vm568 = vweird.f32 %v532
    %vm569 = vweird.f32 %v563
    %vm570 = vmor %vm568, %vm569
    %v571 = vsel %vm570, %v563, %v567
    %v572 = vand.u32 2147483647, %v532
    %vm573 = vcmp.eq.f32.partialorder %v572, 8.507059e+37
    %v574 = vand.u32 %v532, 2147483648
    %v575 = vor.u32 1.1754944e-38, %v574
    %v576 = vsel %vm573, %v575, %v571
    %v577 = vmul.f32 1.0, %v576
    %v578 = vtanh.pop %v520
    %v579 = vmul.f32 %v562, %v429
    %v580 = vmul.f32 %v547, %v578
    %v581 = vadd.f32 %v579, %v580
    %v582 = vtanh.pop %v581
    %v583 = vmul.f32 %v577, %v582
    %s584 = scalar_lea.vmem [#allocation2], 96
    %v585 = vld [vmem:[%s584] sm:$0xff]
    %v586 = vld [vmem:[%s584 + $0x8] sm:$0xff]
    %v587 = vld [vmem:[%s584 + $0x10] sm:$0xff]
    %v588 = vld [vmem:[%s584 + $0x18] sm:$0xff]
    %589 = vmatpush.msra.mxu0 %v125
    %590 = vmatpush.msra.mxu0 %v121
    %591 = vmatpush.msra.mxu0 %v117
    %592 = vmatpush.msra.mxu0 %v113
    %593 = vmatpush.msra.mxu0 %v109
    %594 = vmatpush.msra.mxu0 %v105
    %595 = vmatpush.msra.mxu0 %v101
    %596 = vmatpush.msra.mxu0 %v97
    %597 = vmatpush.msra.mxu0 %v93
    %598 = vmatpush.msra.mxu0 %v89
    %599 = vmatpush.msra.mxu0 %v85
    %600 = vmatpush.msra.mxu0 %v81
    %601 = vmatpush.msra.mxu0 %v77
    %602 = vmatpush.msra.mxu0 %v73
    %603 = vmatpush.msra.mxu0 %v69
    %604 = vmatpush.msra.mxu0 %v65
    %605 = vmatmul.f32.gmra.mxu0 %v583
    %v606 = vpop.f32.mrf.mxu0
    %v607 = vadd.f32 0.0, %v606
    %608 = vdwg.mxu0
    %609 = vmatpush.msra.mxu0 %v126
    %610 = vmatpush.msra.mxu0 %v122
    %611 = vmatpush.msra.mxu0 %v118
    %612 = vmatpush.msra.mxu0 %v114
    %613 = vmatpush.msra.mxu0 %v110
    %614 = vmatpush.msra.mxu0 %v106
    %615 = vmatpush.msra.mxu0 %v102
    %616 = vmatpush.msra.mxu0 %v98
    %617 = vmatpush.msra.mxu0 %v94
    %618 = vmatpush.msra.mxu0 %v90
    %619 = vmatpush.msra.mxu0 %v86
    %620 = vmatpush.msra.mxu0 %v82
    %621 = vmatpush.msra.mxu0 %v78
    %622 = vmatpush.msra.mxu0 %v74
    %623 = vmatpush.msra.mxu0 %v70
    %624 = vmatpush.msra.mxu0 %v66
    %625 = vmatmul.f32.gmra.mxu0 %v583
    %v626 = vpop.f32.mrf.mxu0
    %v627 = vadd.f32 0.0, %v626
    %628 = vdwg.mxu0
    %629 = vmatpush.msra.mxu0 %v127
    %630 = vmatpush.msra.mxu0 %v123
    %631 = vmatpush.msra.mxu0 %v119
    %632 = vmatpush.msra.mxu0 %v115
    %633 = vmatpush.msra.mxu0 %v111
    %634 = vmatpush.msra.mxu0 %v107
    %635 = vmatpush.msra.mxu0 %v103
    %636 = vmatpush.msra.mxu0 %v99
    %637 = vmatpush.msra.mxu0 %v95
    %638 = vmatpush.msra.mxu0 %v91
    %639 = vmatpush.msra.mxu0 %v87
    %640 = vmatpush.msra.mxu0 %v83
    %641 = vmatpush.msra.mxu0 %v79
    %642 = vmatpush.msra.mxu0 %v75
    %643 = vmatpush.msra.mxu0 %v71
    %644 = vmatpush.msra.mxu0 %v67
    %645 = vmatmul.f32.gmra.mxu0 %v583
    %v646 = vpop.f32.mrf.mxu0
    %v647 = vadd.f32 0.0, %v646
    %648 = vdwg.mxu0
    %649 = vmatpush.msra.mxu0 %v128
    %650 = vmatpush.msra.mxu0 %v124
    %651 = vmatpush.msra.mxu0 %v120
    %652 = vmatpush.msra.mxu0 %v116
    %653 = vmatpush.msra.mxu0 %v112
    %654 = vmatpush.msra.mxu0 %v108
    %655 = vmatpush.msra.mxu0 %v104
    %656 = vmatpush.msra.mxu0 %v100
    %657 = vmatpush.msra.mxu0 %v96
    %658 = vmatpush.msra.mxu0 %v92
    %659 = vmatpush.msra.mxu0 %v88
    %660 = vmatpush.msra.mxu0 %v84
    %661 = vmatpush.msra.mxu0 %v80
    %662 = vmatpush.msra.mxu0 %v76
    %663 = vmatpush.msra.mxu0 %v72
    %664 = vmatpush.msra.mxu0 %v68
    %665 = vmatmul.f32.gmra.mxu0 %v583
    %v666 = vpop.f32.mrf.mxu0
    %v667 = vadd.f32 0.0, %v666
    %668 = vdwg.mxu0
    %v669 = vadd.f32 %v585, %v607
    %v670 = vadd.f32 %v586, %v627
    %v671 = vadd.f32 %v587, %v647
    %v672 = vadd.f32 %v588, %v667
    %v673 = vxor.u32 %v669, 2147483648
    %v674 = vxor.u32 %v670, 2147483648
    %v675 = vxor.u32 %v671, 2147483648
    %v676 = vmul.f32 %v673, 1.442695
    %v677 = vpow.pop %v676
    %v678 = vmul.f32 %v674, 1.442695
    %v679 = vpow.pop %v678
    %v680 = vmul.f32 %v675, 1.442695
    %v681 = vpow.pop %v680
    %v682 = vadd.f32 %v677, 1.0
    %v683 = vadd.f32 %v679, 1.0
    %v684 = vadd.f32 %v681, 1.0
    %v685 = vrcp.pop %v682
    %v686 = vmul.f32 %v682, %v685
    %v687 = vsub.f32 1.0, %v686
    %v688 = vmul.f32 %v685, %v687
    %v689 = vadd.f32 %v685, %v688
    %vm690 = vweird.f32 %v682
    %vm691 = vweird.f32 %v685
    %vm692 = vmor %vm690, %vm691
    %v693 = vsel %vm692, %v685, %v689
    %v694 = vand.u32 2147483647, %v682
    %vm695 = vcmp.eq.f32.partialorder %v694, 8.507059e+37
    %v696 = vand.u32 %v682, 2147483648
    %v697 = vor.u32 1.1754944e-38, %v696
    %v698 = vsel %vm695, %v697, %v693
    %v699 = vmul.f32 1.0, %v698
    %v700 = vrcp.pop %v683
    %v701 = vmul.f32 %v683, %v700
    %v702 = vsub.f32 1.0, %v701
    %v703 = vmul.f32 %v700, %v702
    %v704 = vadd.f32 %v700, %v703
    %vm705 = vweird.f32 %v683
    %vm706 = vweird.f32 %v700
    %vm707 = vmor %vm705, %vm706
    %v708 = vsel %vm707, %v700, %v704
    %v709 = vand.u32 2147483647, %v683
    %vm710 = vcmp.eq.f32.partialorder %v709, 8.507059e+37
    %v711 = vand.u32 %v683, 2147483648
    %v712 = vor.u32 1.1754944e-38, %v711
    %v713 = vsel %vm710, %v712, %v708
    %v714 = vmul.f32 1.0, %v713
    %v715 = vrcp.pop %v684
    %v716 = vmul.f32 %v684, %v715
    %v717 = vsub.f32 1.0, %v716
    %v718 = vmul.f32 %v715, %v717
    %v719 = vadd.f32 %v715, %v718
    %vm720 = vweird.f32 %v684
    %vm721 = vweird.f32 %v715
    %vm722 = vmor %vm720, %vm721
    %v723 = vsel %vm722, %v715, %v719
    %v724 = vand.u32 2147483647, %v684
    %vm725 = vcmp.eq.f32.partialorder %v724, 8.507059e+37
    %v726 = vand.u32 %v684, 2147483648
    %v727 = vor.u32 1.1754944e-38, %v726
    %v728 = vsel %vm725, %v727, %v723
    %v729 = vmul.f32 1.0, %v728
    %v730 = vtanh.pop %v672
    %v731 = vmul.f32 %v714, %v581
    %v732 = vmul.f32 %v699, %v730
    %v733 = vadd.f32 %v731, %v732
    %v734 = vtanh.pop %v733
    %v735 = vmul.f32 %v729, %v734
    %s736 = scalar_lea.vmem [#allocation2], 128
    %v737 = vld [vmem:[%s736] sm:$0xff]
    %v738 = vld [vmem:[%s736 + $0x8] sm:$0xff]
    %v739 = vld [vmem:[%s736 + $0x10] sm:$0xff]
    %v740 = vld [vmem:[%s736 + $0x18] sm:$0xff]
    %741 = vmatpush.msra.mxu0 %v125
    %742 = vmatpush.msra.mxu0 %v121
    %743 = vmatpush.msra.mxu0 %v117
    %744 = vmatpush.msra.mxu0 %v113
    %745 = vmatpush.msra.mxu0 %v109
    %746 = vmatpush.msra.mxu0 %v105
    %747 = vmatpush.msra.mxu0 %v101
    %748 = vmatpush.msra.mxu0 %v97
    %749 = vmatpush.msra.mxu0 %v93
    %750 = vmatpush.msra.mxu0 %v89
    %751 = vmatpush.msra.mxu0 %v85
    %752 = vmatpush.msra.mxu0 %v81
    %753 = vmatpush.msra.mxu0 %v77
    %754 = vmatpush.msra.mxu0 %v73
    %755 = vmatpush.msra.mxu0 %v69
    %756 = vmatpush.msra.mxu0 %v65
    %757 = vmatmul.f32.gmra.mxu0 %v735
    %v758 = vpop.f32.mrf.mxu0
    %v759 = vadd.f32 0.0, %v758
    %760 = vdwg.mxu0
    %761 = vmatpush.msra.mxu0 %v126
    %762 = vmatpush.msra.mxu0 %v122
    %763 = vmatpush.msra.mxu0 %v118
    %764 = vmatpush.msra.mxu0 %v114
    %765 = vmatpush.msra.mxu0 %v110
    %766 = vmatpush.msra.mxu0 %v106
    %767 = vmatpush.msra.mxu0 %v102
    %768 = vmatpush.msra.mxu0 %v98
    %769 = vmatpush.msra.mxu0 %v94
    %770 = vmatpush.msra.mxu0 %v90
    %771 = vmatpush.msra.mxu0 %v86
    %772 = vmatpush.msra.mxu0 %v82
    %773 = vmatpush.msra.mxu0 %v78
    %774 = vmatpush.msra.mxu0 %v74
    %775 = vmatpush.msra.mxu0 %v70
    %776 = vmatpush.msra.mxu0 %v66
    %777 = vmatmul.f32.gmra.mxu0 %v735
    %v778 = vpop.f32.mrf.mxu0
    %v779 = vadd.f32 0.0, %v778
    %780 = vdwg.mxu0
    %781 = vmatpush.msra.mxu0 %v127
    %782 = vmatpush.msra.mxu0 %v123
    %783 = vmatpush.msra.mxu0 %v119
    %784 = vmatpush.msra.mxu0 %v115
    %785 = vmatpush.msra.mxu0 %v111
    %786 = vmatpush.msra.mxu0 %v107
    %787 = vmatpush.msra.mxu0 %v103
    %788 = vmatpush.msra.mxu0 %v99
    %789 = vmatpush.msra.mxu0 %v95
    %790 = vmatpush.msra.mxu0 %v91
    %791 = vmatpush.msra.mxu0 %v87
    %792 = vmatpush.msra.mxu0 %v83
    %793 = vmatpush.msra.mxu0 %v79
    %794 = vmatpush.msra.mxu0 %v75
    %795 = vmatpush.msra.mxu0 %v71
    %796 = vmatpush.msra.mxu0 %v67
    %797 = vmatmul.f32.gmra.mxu0 %v735
    %v798 = vpop.f32.mrf.mxu0
    %v799 = vadd.f32 0.0, %v798
    %800 = vdwg.mxu0
    %801 = vmatpush.msra.mxu0 %v128
    %802 = vmatpush.msra.mxu0 %v124
    %803 = vmatpush.msra.mxu0 %v120
    %804 = vmatpush.msra.mxu0 %v116
    %805 = vmatpush.msra.mxu0 %v112
    %806 = vmatpush.msra.mxu0 %v108
    %807 = vmatpush.msra.mxu0 %v104
    %808 = vmatpush.msra.mxu0 %v100
    %809 = vmatpush.msra.mxu0 %v96
    %810 = vmatpush.msra.mxu0 %v92
    %811 = vmatpush.msra.mxu0 %v88
    %812 = vmatpush.msra.mxu0 %v84
    %813 = vmatpush.msra.mxu0 %v80
    %814 = vmatpush.msra.mxu0 %v76
    %815 = vmatpush.msra.mxu0 %v72
    %816 = vmatpush.msra.mxu0 %v68
    %817 = vmatmul.f32.gmra.mxu0 %v735
    %v818 = vpop.f32.mrf.mxu0
    %v819 = vadd.f32 0.0, %v818
    %820 = vdwg.mxu0
    %v821 = vadd.f32 %v737, %v759
    %v822 = vadd.f32 %v738, %v779
    %v823 = vadd.f32 %v739, %v799
    %v824 = vadd.f32 %v740, %v819
    %v825 = vxor.u32 %v821, 2147483648
    %v826 = vxor.u32 %v822, 2147483648
    %v827 = vxor.u32 %v823, 2147483648
    %v828 = vmul.f32 %v825, 1.442695
    %v829 = vpow.pop %v828
    %v830 = vmul.f32 %v826, 1.442695
    %v831 = vpow.pop %v830
    %v832 = vmul.f32 %v827, 1.442695
    %v833 = vpow.pop %v832
    %v834 = vadd.f32 %v829, 1.0
    %v835 = vadd.f32 %v831, 1.0
    %v836 = vadd.f32 %v833, 1.0
    %v837 = vrcp.pop %v834
    %v838 = vmul.f32 %v834, %v837
    %v839 = vsub.f32 1.0, %v838
    %v840 = vmul.f32 %v837, %v839
    %v841 = vadd.f32 %v837, %v840
    %vm842 = vweird.f32 %v834
    %vm843 = vweird.f32 %v837
    %vm844 = vmor %vm842, %vm843
    %v845 = vsel %vm844, %v837, %v841
    %v846 = vand.u32 2147483647, %v834
    %vm847 = vcmp.eq.f32.partialorder %v846, 8.507059e+37
    %v848 = vand.u32 %v834, 2147483648
    %v849 = vor.u32 1.1754944e-38, %v848
    %v850 = vsel %vm847, %v849, %v845
    %v851 = vmul.f32 1.0, %v850
    %v852 = vrcp.pop %v835
    %v853 = vmul.f32 %v835, %v852
    %v854 = vsub.f32 1.0, %v853
    %v855 = vmul.f32 %v852, %v854
    %v856 = vadd.f32 %v852, %v855
    %vm857 = vweird.f32 %v835
    %vm858 = vweird.f32 %v852
    %vm859 = vmor %vm857, %vm858
    %v860 = vsel %vm859, %v852, %v856
    %v861 = vand.u32 2147483647, %v835
    %vm862 = vcmp.eq.f32.partialorder %v861, 8.507059e+37
    %v863 = vand.u32 %v835, 2147483648
    %v864 = vor.u32 1.1754944e-38, %v863
    %v865 = vsel %vm862, %v864, %v860
    %v866 = vmul.f32 1.0, %v865
    %v867 = vrcp.pop %v836
    %v868 = vmul.f32 %v836, %v867
    %v869 = vsub.f32 1.0, %v868
    %v870 = vmul.f32 %v867, %v869
    %v871 = vadd.f32 %v867, %v870
    %vm872 = vweird.f32 %v836
    %vm873 = vweird.f32 %v867
    %vm874 = vmor %vm872, %vm873
    %v875 = vsel %vm874, %v867, %v871
    %v876 = vand.u32 2147483647, %v836
    %vm877 = vcmp.eq.f32.partialorder %v876, 8.507059e+37
    %v878 = vand.u32 %v836, 2147483648
    %v879 = vor.u32 1.1754944e-38, %v878
    %v880 = vsel %vm877, %v879, %v875
    %v881 = vmul.f32 1.0, %v880
    %v882 = vtanh.pop %v824
    %v883 = vmul.f32 %v866, %v733
    %v884 = vmul.f32 %v851, %v882
    %v885 = vadd.f32 %v883, %v884
    %v886 = vtanh.pop %v885
    %v887 = vmul.f32 %v881, %v886
    %s888 = scalar_lea.vmem [#allocation2], 160
    %v889 = vld [vmem:[%s888] sm:$0xff]
    %v890 = vld [vmem:[%s888 + $0x8] sm:$0xff]
    %v891 = vld [vmem:[%s888 + $0x10] sm:$0xff]
    %v892 = vld [vmem:[%s888 + $0x18] sm:$0xff]
    %893 = vmatpush.msra.mxu0 %v125
    %894 = vmatpush.msra.mxu0 %v121
    %895 = vmatpush.msra.mxu0 %v117
    %896 = vmatpush.msra.mxu0 %v113
    %897 = vmatpush.msra.mxu0 %v109
    %898 = vmatpush.msra.mxu0 %v105
    %899 = vmatpush.msra.mxu0 %v101
    %900 = vmatpush.msra.mxu0 %v97
    %901 = vmatpush.msra.mxu0 %v93
    %902 = vmatpush.msra.mxu0 %v89
    %903 = vmatpush.msra.mxu0 %v85
    %904 = vmatpush.msra.mxu0 %v81
    %905 = vmatpush.msra.mxu0 %v77
    %906 = vmatpush.msra.mxu0 %v73
    %907 = vmatpush.msra.mxu0 %v69
    %908 = vmatpush.msra.mxu0 %v65
    %909 = vmatmul.f32.gmra.mxu0 %v887
    %v910 = vpop.f32.mrf.mxu0
    %v911 = vadd.f32 0.0, %v910
    %912 = vdwg.mxu0
    %913 = vmatpush.msra.mxu0 %v126
    %914 = vmatpush.msra.mxu0 %v122
    %915 = vmatpush.msra.mxu0 %v118
    %916 = vmatpush.msra.mxu0 %v114
    %917 = vmatpush.msra.mxu0 %v110
    %918 = vmatpush.msra.mxu0 %v106
    %919 = vmatpush.msra.mxu0 %v102
    %920 = vmatpush.msra.mxu0 %v98
    %921 = vmatpush.msra.mxu0 %v94
    %922 = vmatpush.msra.mxu0 %v90
    %923 = vmatpush.msra.mxu0 %v86
    %924 = vmatpush.msra.mxu0 %v82
    %925 = vmatpush.msra.mxu0 %v78
    %926 = vmatpush.msra.mxu0 %v74
    %927 = vmatpush.msra.mxu0 %v70
    %928 = vmatpush.msra.mxu0 %v66
    %929 = vmatmul.f32.gmra.mxu0 %v887
    %v930 = vpop.f32.mrf.mxu0
    %v931 = vadd.f32 0.0, %v930
    %932 = vdwg.mxu0
    %933 = vmatpush.msra.mxu0 %v127
    %934 = vmatpush.msra.mxu0 %v123
    %935 = vmatpush.msra.mxu0 %v119
    %936 = vmatpush.msra.mxu0 %v115
    %937 = vmatpush.msra.mxu0 %v111
    %938 = vmatpush.msra.mxu0 %v107
    %939 = vmatpush.msra.mxu0 %v103
    %940 = vmatpush.msra.mxu0 %v99
    %941 = vmatpush.msra.mxu0 %v95
    %942 = vmatpush.msra.mxu0 %v91
    %943 = vmatpush.msra.mxu0 %v87
    %944 = vmatpush.msra.mxu0 %v83
    %945 = vmatpush.msra.mxu0 %v79
    %946 = vmatpush.msra.mxu0 %v75
    %947 = vmatpush.msra.mxu0 %v71
    %948 = vmatpush.msra.mxu0 %v67
    %949 = vmatmul.f32.gmra.mxu0 %v887
    %v950 = vpop.f32.mrf.mxu0
    %v951 = vadd.f32 0.0, %v950
    %952 = vdwg.mxu0
    %953 = vmatpush.msra.mxu0 %v128
    %954 = vmatpush.msra.mxu0 %v124
    %955 = vmatpush.msra.mxu0 %v120
    %956 = vmatpush.msra.mxu0 %v116
    %957 = vmatpush.msra.mxu0 %v112
    %958 = vmatpush.msra.mxu0 %v108
    %959 = vmatpush.msra.mxu0 %v104
    %960 = vmatpush.msra.mxu0 %v100
    %961 = vmatpush.msra.mxu0 %v96
    %962 = vmatpush.msra.mxu0 %v92
    %963 = vmatpush.msra.mxu0 %v88
    %964 = vmatpush.msra.mxu0 %v84
    %965 = vmatpush.msra.mxu0 %v80
    %966 = vmatpush.msra.mxu0 %v76
    %967 = vmatpush.msra.mxu0 %v72
    %968 = vmatpush.msra.mxu0 %v68
    %969 = vmatmul.f32.gmra.mxu0 %v887
    %v970 = vpop.f32.mrf.mxu0
    %v971 = vadd.f32 0.0, %v970
    %972 = vdwg.mxu0
    %v973 = vadd.f32 %v889, %v911
    %v974 = vadd.f32 %v890, %v931
    %v975 = vadd.f32 %v891, %v951
    %v976 = vadd.f32 %v892, %v971
    %v977 = vxor.u32 %v973, 2147483648
    %v978 = vxor.u32 %v974, 2147483648
    %v979 = vxor.u32 %v975, 2147483648
    %v980 = vmul.f32 %v977, 1.442695
    %v981 = vpow.pop %v980
    %v982 = vmul.f32 %v978, 1.442695
    %v983 = vpow.pop %v982
    %v984 = vmul.f32 %v979, 1.442695
    %v985 = vpow.pop %v984
    %v986 = vadd.f32 %v981, 1.0
    %v987 = vadd.f32 %v983, 1.0
    %v988 = vadd.f32 %v985, 1.0
    %v989 = vrcp.pop %v986
    %v990 = vmul.f32 %v986, %v989
    %v991 = vsub.f32 1.0, %v990
    %v992 = vmul.f32 %v989, %v991
    %v993 = vadd.f32 %v989, %v992
    %vm994 = vweird.f32 %v986
    %vm995 = vweird.f32 %v989
    %vm996 = vmor %vm994, %vm995
    %v997 = vsel %vm996, %v989, %v993
    %v998 = vand.u32 2147483647, %v986
    %vm999 = vcmp.eq.f32.partialorder %v998, 8.507059e+37
    %v1000 = vand.u32 %v986, 2147483648
    %v1001 = vor.u32 1.1754944e-38, %v1000
    %v1002 = vsel %vm999, %v1001, %v997
    %v1003 = vmul.f32 1.0, %v1002
    %v1004 = vrcp.pop %v987
    %v1005 = vmul.f32 %v987, %v1004
    %v1006 = vsub.f32 1.0, %v1005
    %v1007 = vmul.f32 %v1004, %v1006
    %v1008 = vadd.f32 %v1004, %v1007
    %vm1009 = vweird.f32 %v987
    %vm1010 = vweird.f32 %v1004
    %vm1011 = vmor %vm1009, %vm1010
    %v1012 = vsel %vm1011, %v1004, %v1008
    %v1013 = vand.u32 2147483647, %v987
    %vm1014 = vcmp.eq.f32.partialorder %v1013, 8.507059e+37
    %v1015 = vand.u32 %v987, 2147483648
    %v1016 = vor.u32 1.1754944e-38, %v1015
    %v1017 = vsel %vm1014, %v1016, %v1012
    %v1018 = vmul.f32 1.0, %v1017
    %v1019 = vrcp.pop %v988
    %v1020 = vmul.f32 %v988, %v1019
    %v1021 = vsub.f32 1.0, %v1020
    %v1022 = vmul.f32 %v1019, %v1021
    %v1023 = vadd.f32 %v1019, %v1022
    %vm1024 = vweird.f32 %v988
    %vm1025 = vweird.f32 %v1019
    %vm1026 = vmor %vm1024, %vm1025
    %v1027 = vsel %vm1026, %v1019, %v1023
    %v1028 = vand.u32 2147483647, %v988
    %vm1029 = vcmp.eq.f32.partialorder %v1028, 8.507059e+37
    %v1030 = vand.u32 %v988, 2147483648
    %v1031 = vor.u32 1.1754944e-38, %v1030
    %v1032 = vsel %vm1029, %v1031, %v1027
    %v1033 = vmul.f32 1.0, %v1032
    %v1034 = vtanh.pop %v976
    %v1035 = vmul.f32 %v1018, %v885
    %v1036 = vmul.f32 %v1003, %v1034
    %v1037 = vadd.f32 %v1035, %v1036
    %v1038 = vtanh.pop %v1037
    %v1039 = vmul.f32 %v1033, %v1038
    %s1040 = scalar_lea.vmem [#allocation2], 192
    %v1041 = vld [vmem:[%s1040] sm:$0xff]
    %v1042 = vld [vmem:[%s1040 + $0x8] sm:$0xff]
    %v1043 = vld [vmem:[%s1040 + $0x10] sm:$0xff]
    %v1044 = vld [vmem:[%s1040 + $0x18] sm:$0xff]
    %1045 = vmatpush.msra.mxu0 %v125
    %1046 = vmatpush.msra.mxu0 %v121
    %1047 = vmatpush.msra.mxu0 %v117
    %1048 = vmatpush.msra.mxu0 %v113
    %1049 = vmatpush.msra.mxu0 %v109
    %1050 = vmatpush.msra.mxu0 %v105
    %1051 = vmatpush.msra.mxu0 %v101
    %1052 = vmatpush.msra.mxu0 %v97
    %1053 = vmatpush.msra.mxu0 %v93
    %1054 = vmatpush.msra.mxu0 %v89
    %1055 = vmatpush.msra.mxu0 %v85
    %1056 = vmatpush.msra.mxu0 %v81
    %1057 = vmatpush.msra.mxu0 %v77
    %1058 = vmatpush.msra.mxu0 %v73
    %1059 = vmatpush.msra.mxu0 %v69
    %1060 = vmatpush.msra.mxu0 %v65
    %1061 = vmatmul.f32.gmra.mxu0 %v1039
    %v1062 = vpop.f32.mrf.mxu0
    %v1063 = vadd.f32 0.0, %v1062
    %1064 = vdwg.mxu0
    %1065 = vmatpush.msra.mxu0 %v126
    %1066 = vmatpush.msra.mxu0 %v122
    %1067 = vmatpush.msra.mxu0 %v118
    %1068 = vmatpush.msra.mxu0 %v114
    %1069 = vmatpush.msra.mxu0 %v110
    %1070 = vmatpush.msra.mxu0 %v106
    %1071 = vmatpush.msra.mxu0 %v102
    %1072 = vmatpush.msra.mxu0 %v98
    %1073 = vmatpush.msra.mxu0 %v94
    %1074 = vmatpush.msra.mxu0 %v90
    %1075 = vmatpush.msra.mxu0 %v86
    %1076 = vmatpush.msra.mxu0 %v82
    %1077 = vmatpush.msra.mxu0 %v78
    %1078 = vmatpush.msra.mxu0 %v74
    %1079 = vmatpush.msra.mxu0 %v70
    %1080 = vmatpush.msra.mxu0 %v66
    %1081 = vmatmul.f32.gmra.mxu0 %v1039
    %v1082 = vpop.f32.mrf.mxu0
    %v1083 = vadd.f32 0.0, %v1082
    %1084 = vdwg.mxu0
    %1085 = vmatpush.msra.mxu0 %v127
    %1086 = vmatpush.msra.mxu0 %v123
    %1087 = vmatpush.msra.mxu0 %v119
    %1088 = vmatpush.msra.mxu0 %v115
    %1089 = vmatpush.msra.mxu0 %v111
    %1090 = vmatpush.msra.mxu0 %v107
    %1091 = vmatpush.msra.mxu0 %v103
    %1092 = vmatpush.msra.mxu0 %v99
    %1093 = vmatpush.msra.mxu0 %v95
    %1094 = vmatpush.msra.mxu0 %v91
    %1095 = vmatpush.msra.mxu0 %v87
    %1096 = vmatpush.msra.mxu0 %v83
    %1097 = vmatpush.msra.mxu0 %v79
    %1098 = vmatpush.msra.mxu0 %v75
    %1099 = vmatpush.msra.mxu0 %v71
    %1100 = vmatpush.msra.mxu0 %v67
    %1101 = vmatmul.f32.gmra.mxu0 %v1039
    %v1102 = vpop.f32.mrf.mxu0
    %v1103 = vadd.f32 0.0, %v1102
    %1104 = vdwg.mxu0
    %1105 = vmatpush.msra.mxu0 %v128
    %1106 = vmatpush.msra.mxu0 %v124
    %1107 = vmatpush.msra.mxu0 %v120
    %1108 = vmatpush.msra.mxu0 %v116
    %1109 = vmatpush.msra.mxu0 %v112
    %1110 = vmatpush.msra.mxu0 %v108
    %1111 = vmatpush.msra.mxu0 %v104
    %1112 = vmatpush.msra.mxu0 %v100
    %1113 = vmatpush.msra.mxu0 %v96
    %1114 = vmatpush.msra.mxu0 %v92
    %1115 = vmatpush.msra.mxu0 %v88
    %1116 = vmatpush.msra.mxu0 %v84
    %1117 = vmatpush.msra.mxu0 %v80
    %1118 = vmatpush.msra.mxu0 %v76
    %1119 = vmatpush.msra.mxu0 %v72
    %1120 = vmatpush.msra.mxu0 %v68
    %1121 = vmatmul.f32.gmra.mxu0 %v1039
    %v1122 = vpop.f32.mrf.mxu0
    %v1123 = vadd.f32 0.0, %v1122
    %1124 = vdwg.mxu0
    %v1125 = vadd.f32 %v1041, %v1063
    %v1126 = vadd.f32 %v1042, %v1083
    %v1127 = vadd.f32 %v1043, %v1103
    %v1128 = vadd.f32 %v1044, %v1123
    %v1129 = vxor.u32 %v1125, 2147483648
    %v1130 = vxor.u32 %v1126, 2147483648
    %v1131 = vxor.u32 %v1127, 2147483648
    %v1132 = vmul.f32 %v1129, 1.442695
    %v1133 = vpow.pop %v1132
    %v1134 = vmul.f32 %v1130, 1.442695
    %v1135 = vpow.pop %v1134
    %v1136 = vmul.f32 %v1131, 1.442695
    %v1137 = vpow.pop %v1136
    %v1138 = vadd.f32 %v1133, 1.0
    %v1139 = vadd.f32 %v1135, 1.0
    %v1140 = vadd.f32 %v1137, 1.0
    %v1141 = vrcp.pop %v1138
    %v1142 = vmul.f32 %v1138, %v1141
    %v1143 = vsub.f32 1.0, %v1142
    %v1144 = vmul.f32 %v1141, %v1143
    %v1145 = vadd.f32 %v1141, %v1144
    %vm1146 = vweird.f32 %v1138
    %vm1147 = vweird.f32 %v1141
    %vm1148 = vmor %vm1146, %vm1147
    %v1149 = vsel %vm1148, %v1141, %v1145
    %v1150 = vand.u32 2147483647, %v1138
    %vm1151 = vcmp.eq.f32.partialorder %v1150, 8.507059e+37
    %v1152 = vand.u32 %v1138, 2147483648
    %v1153 = vor.u32 1.1754944e-38, %v1152
    %v1154 = vsel %vm1151, %v1153, %v1149
    %v1155 = vmul.f32 1.0, %v1154
    %v1156 = vrcp.pop %v1139
    %v1157 = vmul.f32 %v1139, %v1156
    %v1158 = vsub.f32 1.0, %v1157
    %v1159 = vmul.f32 %v1156, %v1158
    %v1160 = vadd.f32 %v1156, %v1159
    %vm1161 = vweird.f32 %v1139
    %vm1162 = vweird.f32 %v1156
    %vm1163 = vmor %vm1161, %vm1162
    %v1164 = vsel %vm1163, %v1156, %v1160
    %v1165 = vand.u32 2147483647, %v1139
    %vm1166 = vcmp.eq.f32.partialorder %v1165, 8.507059e+37
    %v1167 = vand.u32 %v1139, 2147483648
    %v1168 = vor.u32 1.1754944e-38, %v1167
    %v1169 = vsel %vm1166, %v1168, %v1164
    %v1170 = vmul.f32 1.0, %v1169
    %v1171 = vrcp.pop %v1140
    %v1172 = vmul.f32 %v1140, %v1171
    %v1173 = vsub.f32 1.0, %v1172
    %v1174 = vmul.f32 %v1171, %v1173
    %v1175 = vadd.f32 %v1171, %v1174
    %vm1176 = vweird.f32 %v1140
    %vm1177 = vweird.f32 %v1171
    %vm1178 = vmor %vm1176, %vm1177
    %v1179 = vsel %vm1178, %v1171, %v1175
    %v1180 = vand.u32 2147483647, %v1140
    %vm1181 = vcmp.eq.f32.partialorder %v1180, 8.507059e+37
    %v1182 = vand.u32 %v1140, 2147483648
    %v1183 = vor.u32 1.1754944e-38, %v1182
    %v1184 = vsel %vm1181, %v1183, %v1179
    %v1185 = vmul.f32 1.0, %v1184
    %v1186 = vtanh.pop %v1128
    %v1187 = vmul.f32 %v1170, %v1037
    %v1188 = vmul.f32 %v1155, %v1186
    %v1189 = vadd.f32 %v1187, %v1188
    %v1190 = vtanh.pop %v1189
    %v1191 = vmul.f32 %v1185, %v1190
    %s1192 = scalar_lea.vmem [#allocation2], 224
    %v1193 = vld [vmem:[%s1192] sm:$0xff]
    %v1194 = vld [vmem:[%s1192 + $0x8] sm:$0xff]
    %v1195 = vld [vmem:[%s1192 + $0x10] sm:$0xff]
    %v1196 = vld [vmem:[%s1192 + $0x18] sm:$0xff]
    %1197 = vmatpush.msra.mxu0 %v125
    %1198 = vmatpush.msra.mxu0 %v121
    %1199 = vmatpush.msra.mxu0 %v117
    %1200 = vmatpush.msra.mxu0 %v113
    %1201 = vmatpush.msra.mxu0 %v109
    %1202 = vmatpush.msra.mxu0 %v105
    %1203 = vmatpush.msra.mxu0 %v101
    %1204 = vmatpush.msra.mxu0 %v97
    %1205 = vmatpush.msra.mxu0 %v93
    %1206 = vmatpush.msra.mxu0 %v89
    %1207 = vmatpush.msra.mxu0 %v85
    %1208 = vmatpush.msra.mxu0 %v81
    %1209 = vmatpush.msra.mxu0 %v77
    %1210 = vmatpush.msra.mxu0 %v73
    %1211 = vmatpush.msra.mxu0 %v69
    %1212 = vmatpush.msra.mxu0 %v65
    %1213 = vmatmul.f32.gmra.mxu0 %v1191
    %v1214 = vpop.f32.mrf.mxu0
    %v1215 = vadd.f32 0.0, %v1214
    %1216 = vdwg.mxu0
    %1217 = vmatpush.msra.mxu0 %v126
    %1218 = vmatpush.msra.mxu0 %v122
    %1219 = vmatpush.msra.mxu0 %v118
    %1220 = vmatpush.msra.mxu0 %v114
    %1221 = vmatpush.msra.mxu0 %v110
    %1222 = vmatpush.msra.mxu0 %v106
    %1223 = vmatpush.msra.mxu0 %v102
    %1224 = vmatpush.msra.mxu0 %v98
    %1225 = vmatpush.msra.mxu0 %v94
    %1226 = vmatpush.msra.mxu0 %v90
    %1227 = vmatpush.msra.mxu0 %v86
    %1228 = vmatpush.msra.mxu0 %v82
    %1229 = vmatpush.msra.mxu0 %v78
    %1230 = vmatpush.msra.mxu0 %v74
    %1231 = vmatpush.msra.mxu0 %v70
    %1232 = vmatpush.msra.mxu0 %v66
    %1233 = vmatmul.f32.gmra.mxu0 %v1191
    %v1234 = vpop.f32.mrf.mxu0
    %v1235 = vadd.f32 0.0, %v1234
    %1236 = vdwg.mxu0
    %1237 = vmatpush.msra.mxu0 %v127
    %1238 = vmatpush.msra.mxu0 %v123
    %1239 = vmatpush.msra.mxu0 %v119
    %1240 = vmatpush.msra.mxu0 %v115
    %1241 = vmatpush.msra.mxu0 %v111
    %1242 = vmatpush.msra.mxu0 %v107
    %1243 = vmatpush.msra.mxu0 %v103
    %1244 = vmatpush.msra.mxu0 %v99
    %1245 = vmatpush.msra.mxu0 %v95
    %1246 = vmatpush.msra.mxu0 %v91
    %1247 = vmatpush.msra.mxu0 %v87
    %1248 = vmatpush.msra.mxu0 %v83
    %1249 = vmatpush.msra.mxu0 %v79
    %1250 = vmatpush.msra.mxu0 %v75
    %1251 = vmatpush.msra.mxu0 %v71
    %1252 = vmatpush.msra.mxu0 %v67
    %1253 = vmatmul.f32.gmra.mxu0 %v1191
    %v1254 = vpop.f32.mrf.mxu0
    %v1255 = vadd.f32 0.0, %v1254
    %1256 = vdwg.mxu0
    %1257 = vmatpush.msra.mxu0 %v128
    %1258 = vmatpush.msra.mxu0 %v124
    %1259 = vmatpush.msra.mxu0 %v120
    %1260 = vmatpush.msra.mxu0 %v116
    %1261 = vmatpush.msra.mxu0 %v112
    %1262 = vmatpush.msra.mxu0 %v108
    %1263 = vmatpush.msra.mxu0 %v104
    %1264 = vmatpush.msra.mxu0 %v100
    %1265 = vmatpush.msra.mxu0 %v96
    %1266 = vmatpush.msra.mxu0 %v92
    %1267 = vmatpush.msra.mxu0 %v88
    %1268 = vmatpush.msra.mxu0 %v84
    %1269 = vmatpush.msra.mxu0 %v80
    %1270 = vmatpush.msra.mxu0 %v76
    %1271 = vmatpush.msra.mxu0 %v72
    %1272 = vmatpush.msra.mxu0 %v68
    %1273 = vmatmul.f32.gmra.mxu0 %v1191
    %v1274 = vpop.f32.mrf.mxu0
    %v1275 = vadd.f32 0.0, %v1274
    %1276 = vdwg.mxu0
    %v1277 = vadd.f32 %v1193, %v1215
    %v1278 = vadd.f32 %v1194, %v1235
    %v1279 = vadd.f32 %v1195, %v1255
    %v1280 = vadd.f32 %v1196, %v1275
    %v1281 = vxor.u32 %v1277, 2147483648
    %v1282 = vxor.u32 %v1278, 2147483648
    %v1283 = vxor.u32 %v1279, 2147483648
    %v1284 = vmul.f32 %v1281, 1.442695
    %v1285 = vpow.pop %v1284
    %v1286 = vmul.f32 %v1282, 1.442695
    %v1287 = vpow.pop %v1286
    %v1288 = vmul.f32 %v1283, 1.442695
    %v1289 = vpow.pop %v1288
    %v1290 = vadd.f32 %v1285, 1.0
    %v1291 = vadd.f32 %v1287, 1.0
    %v1292 = vadd.f32 %v1289, 1.0
    %v1293 = vrcp.pop %v1290
    %v1294 = vmul.f32 %v1290, %v1293
    %v1295 = vsub.f32 1.0, %v1294
    %v1296 = vmul.f32 %v1293, %v1295
    %v1297 = vadd.f32 %v1293, %v1296
    %vm1298 = vweird.f32 %v1290
    %vm1299 = vweird.f32 %v1293
    %vm1300 = vmor %vm1298, %vm1299
    %v1301 = vsel %vm1300, %v1293, %v1297
    %v1302 = vand.u32 2147483647, %v1290
    %vm1303 = vcmp.eq.f32.partialorder %v1302, 8.507059e+37
    %v1304 = vand.u32 %v1290, 2147483648
    %v1305 = vor.u32 1.1754944e-38, %v1304
    %v1306 = vsel %vm1303, %v1305, %v1301
    %v1307 = vmul.f32 1.0, %v1306
    %v1308 = vrcp.pop %v1291
    %v1309 = vmul.f32 %v1291, %v1308
    %v1310 = vsub.f32 1.0, %v1309
    %v1311 = vmul.f32 %v1308, %v1310
    %v1312 = vadd.f32 %v1308, %v1311
    %vm1313 = vweird.f32 %v1291
    %vm1314 = vweird.f32 %v1308
    %vm1315 = vmor %vm1313, %vm1314
    %v1316 = vsel %vm1315, %v1308, %v1312
    %v1317 = vand.u32 2147483647, %v1291
    %vm1318 = vcmp.eq.f32.partialorder %v1317, 8.507059e+37
    %v1319 = vand.u32 %v1291, 2147483648
    %v1320 = vor.u32 1.1754944e-38, %v1319
    %v1321 = vsel %vm1318, %v1320, %v1316
    %v1322 = vmul.f32 1.0, %v1321
    %v1323 = vrcp.pop %v1292
    %v1324 = vmul.f32 %v1292, %v1323
    %v1325 = vsub.f32 1.0, %v1324
    %v1326 = vmul.f32 %v1323, %v1325
    %v1327 = vadd.f32 %v1323, %v1326
    %vm1328 = vweird.f32 %v1292
    %vm1329 = vweird.f32 %v1323
    %vm1330 = vmor %vm1328, %vm1329
    %v1331 = vsel %vm1330, %v1323, %v1327
    %v1332 = vand.u32 2147483647, %v1292
    %vm1333 = vcmp.eq.f32.partialorder %v1332, 8.507059e+37
    %v1334 = vand.u32 %v1292, 2147483648
    %v1335 = vor.u32 1.1754944e-38, %v1334
    %v1336 = vsel %vm1333, %v1335, %v1331
    %v1337 = vmul.f32 1.0, %v1336
    %v1338 = vtanh.pop %v1280
    %v1339 = vmul.f32 %v1322, %v1189
    %v1340 = vmul.f32 %v1307, %v1338
    %v1341 = vadd.f32 %v1339, %v1340
    %v1342 = vtanh.pop %v1341
    %v1343 = vmul.f32 %v1337, %v1342
    %v1344 = vld [vmem:[#allocation7] sm:$0xff]
    %v1345 = vld [vmem:[#allocation7 + $0x8] sm:$0xff]
    %v1346 = vld [vmem:[#allocation7 + $0x10] sm:$0xff]
    %v1347 = vld [vmem:[#allocation7 + $0x18] sm:$0xff]
    %v1348 = vld [vmem:[#allocation7 + $0x20] sm:$0xff]
    %v1349 = vld [vmem:[#allocation7 + $0x28] sm:$0xff]
    %v1350 = vld [vmem:[#allocation7 + $0x30] sm:$0xff]
    %v1351 = vld [vmem:[#allocation7 + $0x38] sm:$0xff]
    %v1352 = vld [vmem:[#allocation7 + $0x40] sm:$0xff]
    %v1353 = vld [vmem:[#allocation7 + $0x48] sm:$0xff]
    %v1354 = vld [vmem:[#allocation7 + $0x50] sm:$0xff]
    %v1355 = vld [vmem:[#allocation7 + $0x58] sm:$0xff]
    %v1356 = vld [vmem:[#allocation7 + $0x60] sm:$0xff]
    %v1357 = vld [vmem:[#allocation7 + $0x68] sm:$0xff]
    %v1358 = vld [vmem:[#allocation7 + $0x70] sm:$0xff]
    %v1359 = vld [vmem:[#allocation7 + $0x78] sm:$0xff]
    %v1360 = vld [vmem:[%s3] sm:$0x1]
    %v1362 = vperm.slane %v1360, 0
    %1364 = vmatpush.msra.mxu0 %v1359
    %1365 = vmatpush.msra.mxu0 %v1358
    %1366 = vmatpush.msra.mxu0 %v1357
    %1367 = vmatpush.msra.mxu0 %v1356
    %1368 = vmatpush.msra.mxu0 %v1355
    %1369 = vmatpush.msra.mxu0 %v1354
    %1370 = vmatpush.msra.mxu0 %v1353
    %1371 = vmatpush.msra.mxu0 %v1352
    %1372 = vmatpush.msra.mxu0 %v1351
    %1373 = vmatpush.msra.mxu0 %v1350
    %1374 = vmatpush.msra.mxu0 %v1349
    %1375 = vmatpush.msra.mxu0 %v1348
    %1376 = vmatpush.msra.mxu0 %v1347
    %1377 = vmatpush.msra.mxu0 %v1346
    %1378 = vmatpush.msra.mxu0 %v1345
    %1379 = vmatpush.msra.mxu0 %v1344
    %1380 = vmatmul.f32.gmra.mxu0 %v1343
    %v1381 = vpop.f32.mrf.mxu0
    %v1382 = vadd.f32 %v1362, %v1381
    %1383 = vdwg.mxu0
    %1384 = vst [vmem:[#allocation8] sm:$0xff] %v1382
    // Predicated region
    $region30: #{tpu_custom_call.1} parent=1 // pred_check
      _
    $region31: #{tpu_custom_call.1} parent=1 // pred_check_branch
      %1386 = sbr.rel (0) target = $region33
    $region32: #{tpu_custom_call.1} parent=1 // pred_region
      %1388 = vsyncadd [#allocation4], 0
      %s1390 = sshll.u32 [#allocation8], 4
      %s1391 = int_to_ptr.vmem [resolvable:$true] %s1390
      %s1392 = sshll.u32 %s4, 4
      %s1393 = int_to_ptr.hbm [resolvable:$true] %s1392
      %1395 = dma.vmem_to_hbm [thread:$0]  %s1391, 128, %s1393, [#allocation4]
    $region33: #{tpu_custom_call.1} parent=1 // pred_fallthru
      _
    // Predicated region
    $region34: #{tpu_custom_call.1} parent=1 // pred_check
      _
    $region35: #{tpu_custom_call.1} parent=1 // pred_check_branch
      %1397 = sbr.rel (0) target = $region37
    $region36: #{tpu_custom_call.1} parent=1 // pred_region
      %1399 = dma.done [#allocation4], 128
    $region37: #{tpu_custom_call.1} parent=1 // pred_fallthru
      _
    %1400 = vsyncpa [#allocation3], 1
    %1401 = vsyncpa [#allocation6], 1
    %1402 = vsyncpa [#allocation4], 1

</llo_original>
